<compile_context>
chip_gen: v5e
topology: v5e:2x2
jax: 0.10.0
libtpu: 0.0.40
codegen_flags: <defaults>
</compile_context>

<pallas_src>
import jax
import jax.numpy as jnp
import numpy as np
from jax.experimental import pallas as pl
from jax.experimental.pallas import tpu as pltpu

_BN_EPS = 1e-5


def _bn_relu(h, gamma, beta, eps=_BN_EPS):
    """One-pass training-mode BatchNorm1d over rows (rows span (batch, pos)),
    fused with ReLU.  Biased variance — matches nn.BatchNorm1d in train()."""
    m = jnp.mean(h, axis=0, keepdims=True)
    ms = jnp.mean(h * h, axis=0, keepdims=True)
    scale = gamma * jax.lax.rsqrt(ms - m * m + eps)
    return jnp.maximum(h * scale + (beta - m * scale), 0.0)


def cnn_kernel(xt_ref, ws_ref, wfc_ref, out_ref):
    n, cin = xt_ref.shape                   # n = B*L channels-last rows
    batch, out_dim = out_ref.shape
    win = n // batch                        # L (window_size)
    c2 = ws_ref.shape[1]                    # 32
    c1 = (ws_ref.shape[0] - 32) // 3        # 16  (ws rows = 3*8 + 3*c1 + 8)
    base = 24 + 3 * c1                      # start of packed small vectors

    g1, b1 = ws_ref[base + 0:base + 1, 0:c1], ws_ref[base + 1:base + 2, 0:c1]
    g2, b2 = ws_ref[base + 2:base + 3, 0:c2], ws_ref[base + 3:base + 4, 0:c2]
    bfc = ws_ref[base + 4:base + 5, 0:out_dim]

    # Per-window boundary masks (row r = b*L + l).  Static compare/OR chain:
    # cheap at B=4 and avoids vector int rem/div lowering concerns.
    row = jax.lax.broadcasted_iota(jnp.int32, (n, 1), 0)
    first = row == 0
    last = row == win - 1
    for b in range(1, batch):
        first = first | (row == b * win)
        last = last | (row == b * win + win - 1)

    def taps(v):
        # v[r-1] / v[r+1] via whole-array sublane rotates (XLU slot); the
        # rotate wraparound rows are exactly the masked boundary rows.
        prev = jnp.where(first, 0.0, pltpu.roll(v, 1, 0))
        nxt = jnp.where(last, 0.0, pltpu.roll(v, n - 1, 0))
        return prev, nxt

    # ---- conv1 + BN1 + ReLU: three accumulated (Cin -> c1) matmuls.
    x = xt_ref[...]
    xp, xn = taps(x)
    h = (jnp.dot(xp, ws_ref[0:cin, 0:c1], preferred_element_type=jnp.float32)
         + jnp.dot(x, ws_ref[8:8 + cin, 0:c1], preferred_element_type=jnp.float32)
         + jnp.dot(xn, ws_ref[16:16 + cin, 0:c1], preferred_element_type=jnp.float32))
    h = _bn_relu(h, g1, b1)                                        # (n, c1)

    # ---- conv2 + BN2 + ReLU: three accumulated (c1 -> c2) matmuls.
    hp, hn = taps(h)
    h = (jnp.dot(hp, ws_ref[24:24 + c1, :], preferred_element_type=jnp.float32)
         + jnp.dot(h, ws_ref[24 + c1:24 + 2 * c1, :], preferred_element_type=jnp.float32)
         + jnp.dot(hn, ws_ref[24 + 2 * c1:24 + 3 * c1, :], preferred_element_type=jnp.float32))
    h = _bn_relu(h, g2, b2)                                        # (n, c2)

    # ---- fc: one VPU multiply against the lane-packed slab, then two tiny
    # MXU reductions (row segment-sum per window, lane-block selector per
    # output).  No cross-lane XLU reduces.
    prod = jnp.concatenate([h] * out_dim, axis=1) * wfc_ref[...]   # (n, out_dim*c2)

    rb = jax.lax.broadcasted_iota(jnp.int32, (batch, n), 0)
    cr = jax.lax.broadcasted_iota(jnp.int32, (batch, n), 1)
    seg = ((cr >= rb * win) & (cr < (rb + 1) * win)).astype(jnp.float32)
    tmp = jnp.dot(seg, prod, preferred_element_type=jnp.float32)   # (batch, out_dim*c2)

    ln = jax.lax.broadcasted_iota(jnp.int32, (out_dim * c2, out_dim), 0)
    oc = jax.lax.broadcasted_iota(jnp.int32, (out_dim * c2, out_dim), 1)
    sel = ((ln >= oc * c2) & (ln < (oc + 1) * c2)).astype(jnp.float32)
    out_ref[...] = jnp.dot(tmp, sel, preferred_element_type=jnp.float32) + bfc


def prepare_params(params, *, batch):
    """Hoisted weight permutations + packing; run ONCE, not per forward call."""
    c1, cin, k = params["conv1_w"].shape
    c2 = params["conv2_w"].shape[0]
    out_dim, fc_in = params["fc_w"].shape
    win = fc_in // c2
    assert k == 3 and cin <= 8

    # Conv weights as per-tap matmul operands: (tap, Cin_block, Cout).
    w1 = jnp.transpose(params["conv1_w"], (2, 1, 0))   # (3, Cin, c1); tap0 = x[l-1]
    w2 = jnp.transpose(params["conv2_w"], (2, 1, 0))   # (3, c1, c2)

    # One sublane-aligned packed block (single DMA):
    #   rows [8t : 8t+Cin],        lanes [0:c1] -> conv1 tap t (prev/mid/next)
    #   rows [24+t*c1 : 24+(t+1)*c1], all lanes -> conv2 tap t
    #   rows 24+3*c1 .. +4                      -> bn1_g, bn1_b, bn2_g, bn2_b, fc_b
    # Conv biases intentionally dropped: training-mode BN mean subtraction
    # cancels them exactly.
    rows = 24 + 3 * c1 + 8
    ws = jnp.zeros((rows, c2), jnp.float32)
    for t in range(3):
        ws = ws.at[8 * t:8 * t + cin, 0:c1].set(w1[t])
        ws = ws.at[24 + t * c1:24 + (t + 1) * c1, 0:c2].set(w2[t])
    base = 24 + 3 * c1
    ws = ws.at[base + 0, 0:c1].set(params["bn1_g"])
    ws = ws.at[base + 1, 0:c1].set(params["bn1_b"])
    ws = ws.at[base + 2, 0:c2].set(params["bn2_g"])
    ws = ws.at[base + 3, 0:c2].set(params["bn2_b"])
    ws = ws.at[base + 4, 0:out_dim].set(params["fc_b"])

    # fc weight: PyTorch W is (out, C2*L) over a (C, L)-order flatten.  Lay it
    # out as one lane-dense (B*L, out_dim*C2) slab so the kernel does a single
    # VPU multiply followed by two tiny MXU reductions.
    wfc = params["fc_w"].reshape(out_dim, c2, win).transpose(2, 0, 1)  # (L, out, C2)
    wfc = wfc.reshape(win, out_dim * c2)
    wfc = jnp.tile(wfc, (batch, 1)).astype(jnp.float32)                # (B*L, out*C2)

    return {"ws": ws, "wfc": wfc}


@jax.jit
def cnn_forward_pallas(x_ncl, prep):
    """x_ncl: (B, C_in, L), same layout as the PyTorch module's input."""
    batch, cin, win = x_ncl.shape
    ws, wfc = prep["ws"], prep["wfc"]
    out_dim = wfc.shape[1] // ws.shape[1]

    # Only wrapper-side prep: channels-last flat rows (one fused XLA copy).
    # Padding / im2col now happens in-kernel via roll + masks.
    xt = jnp.transpose(x_ncl, (0, 2, 1)).reshape(batch * win, cin).astype(jnp.float32)

    vmem = pl.BlockSpec(memory_space=pltpu.MemorySpace.VMEM)
    return pl.pallas_call(
        cnn_kernel,
        out_shape=jax.ShapeDtypeStruct((batch, out_dim), jnp.float32),
        in_specs=[vmem] * 3,
        out_specs=vmem,
    )(xt, ws, wfc)


def cnn_forward_ref(x, p):
    """Pure-JAX reference (PyTorch module semantics in train mode, incl. conv
    biases — the kernel drops them since BN cancels them exactly)."""
    def conv1d(h, w, b):
        y = jax.lax.conv_general_dilated(
            h, w, window_strides=(1,), padding="SAME",
            dimension_numbers=("NCH", "OIH", "NCH"))
        return y + b[None, :, None]

    def bn(h, g, be, eps=_BN_EPS):
        m = jnp.mean(h, axis=(0, 2), keepdims=True)
        v = jnp.mean((h - m) ** 2, axis=(0, 2), keepdims=True)
        return g[None, :, None] * (h - m) / jnp.sqrt(v + eps) + be[None, :, None]

    h = jax.nn.relu(bn(conv1d(x, p["conv1_w"], p["conv1_b"]), p["bn1_g"], p["bn1_b"]))
    h = jax.nn.relu(bn(conv1d(h, p["conv2_w"], p["conv2_b"]), p["bn2_g"], p["bn2_b"]))
    hf = h.reshape(h.shape[0], -1)                                 # (C, L)-major flatten
    return hf @ p["fc_w"].T + p["fc_b"]


if __name__ == "__main__":
    B, Cin, L, out_dim = 4, 6, 30, 2                               # window_size = 30

    key = jax.random.PRNGKey(0)
    ks = jax.random.split(key, 11)
    params = {
        "conv1_w": 0.10 * jax.random.normal(ks[0], (16, Cin, 3), jnp.float32),
        "conv1_b": 0.10 * jax.random.normal(ks[1], (16,), jnp.float32),
        "bn1_g": 1.0 + 0.10 * jax.random.normal(ks[2], (16,), jnp.float32),
        "bn1_b": 0.10 * jax.random.normal(ks[3], (16,), jnp.float32),
        "conv2_w": 0.10 * jax.random.normal(ks[4], (32, 16, 3), jnp.float32),
        "conv2_b": 0.10 * jax.random.normal(ks[5], (32,), jnp.float32),
        "bn2_g": 1.0 + 0.10 * jax.random.normal(ks[6], (32,), jnp.float32),
        "bn2_b": 0.10 * jax.random.normal(ks[7], (32,), jnp.float32),
        "fc_w": 0.05 * jax.random.normal(ks[8], (out_dim, 32 * L), jnp.float32),
        "fc_b": 0.05 * jax.random.normal(ks[9], (out_dim,), jnp.float32),
    }
    x = jax.random.normal(ks[10], (B, Cin, L), jnp.float32)

    prep = prepare_params(params, batch=B)                         # hoisted: once
    out = jax.block_until_ready(cnn_forward_pallas(x, prep))
    ref = cnn_forward_ref(x, params)
    np.testing.assert_allclose(np.asarray(out), np.asarray(ref), rtol=1e-4, atol=1e-4)
    print("KERNEL_OK")
</pallas_src>

<mosaic_0001>
module attributes {stable_mosaic.version = 11 : i64} {
  func.func @cnn_kernel(%arg0: memref<120x6xf32, #tpu.memory_space<vmem>>, %arg1: memref<80x32xf32, #tpu.memory_space<vmem>>, %arg2: memref<120x64xf32, #tpu.memory_space<vmem>>, %arg3: memref<4x2xf32, #tpu.memory_space<vmem>>) attributes {dimension_semantics = [], scalar_prefetch = 0 : i64, scratch_operands = 0 : i64, tpu.core_type = #tpu.core_type<tc>} {
    %c72 = arith.constant 72 : index
    %c0 = arith.constant 0 : index
    %0 = vector.load %arg1[%c72, %c0] : memref<80x32xf32, #tpu.memory_space<vmem>>, vector<1x16xf32>
    %c73 = arith.constant 73 : index
    %c0_0 = arith.constant 0 : index
    %1 = vector.load %arg1[%c73, %c0_0] : memref<80x32xf32, #tpu.memory_space<vmem>>, vector<1x16xf32>
    %c74 = arith.constant 74 : index
    %c0_1 = arith.constant 0 : index
    %2 = vector.load %arg1[%c74, %c0_1] : memref<80x32xf32, #tpu.memory_space<vmem>>, vector<1x32xf32>
    %c75 = arith.constant 75 : index
    %c0_2 = arith.constant 0 : index
    %3 = vector.load %arg1[%c75, %c0_2] : memref<80x32xf32, #tpu.memory_space<vmem>>, vector<1x32xf32>
    %c76 = arith.constant 76 : index
    %c0_3 = arith.constant 0 : index
    %4 = vector.load %arg1[%c76, %c0_3] : memref<80x32xf32, #tpu.memory_space<vmem>>, vector<1x2xf32>
    %5 = tpu.iota {dimensions = array<i32: 0>} : vector<120x1xi32>
    %c0_i32 = arith.constant 0 : i32
    %6 = vector.broadcast %c0_i32 : i32 to vector<120x1xi32>
    %7 = arith.cmpi eq, %5, %6 : vector<120x1xi32>
    %c29_i32 = arith.constant 29 : i32
    %8 = vector.broadcast %c29_i32 : i32 to vector<120x1xi32>
    %9 = arith.cmpi eq, %5, %8 : vector<120x1xi32>
    %c30_i32 = arith.constant 30 : i32
    %10 = vector.broadcast %c30_i32 : i32 to vector<120x1xi32>
    %11 = arith.cmpi eq, %5, %10 : vector<120x1xi32>
    %12 = arith.ori %7, %11 : vector<120x1xi1>
    %c59_i32 = arith.constant 59 : i32
    %13 = vector.broadcast %c59_i32 : i32 to vector<120x1xi32>
    %14 = arith.cmpi eq, %5, %13 : vector<120x1xi32>
    %15 = arith.ori %9, %14 : vector<120x1xi1>
    %c60_i32 = arith.constant 60 : i32
    %16 = vector.broadcast %c60_i32 : i32 to vector<120x1xi32>
    %17 = arith.cmpi eq, %5, %16 : vector<120x1xi32>
    %18 = arith.ori %12, %17 : vector<120x1xi1>
    %c89_i32 = arith.constant 89 : i32
    %19 = vector.broadcast %c89_i32 : i32 to vector<120x1xi32>
    %20 = arith.cmpi eq, %5, %19 : vector<120x1xi32>
    %21 = arith.ori %15, %20 : vector<120x1xi1>
    %c90_i32 = arith.constant 90 : i32
    %22 = vector.broadcast %c90_i32 : i32 to vector<120x1xi32>
    %23 = arith.cmpi eq, %5, %22 : vector<120x1xi32>
    %24 = arith.ori %18, %23 : vector<120x1xi1>
    %c119_i32 = arith.constant 119 : i32
    %25 = vector.broadcast %c119_i32 : i32 to vector<120x1xi32>
    %26 = arith.cmpi eq, %5, %25 : vector<120x1xi32>
    %27 = arith.ori %21, %26 : vector<120x1xi1>
    %c0_4 = arith.constant 0 : index
    %c0_5 = arith.constant 0 : index
    %28 = vector.load %arg0[%c0_4, %c0_5] : memref<120x6xf32, #tpu.memory_space<vmem>>, vector<120x6xf32>
    %c1_i32 = arith.constant 1 : i32
    %29 = tpu.dynamic_rotate %28 by %c1_i32 dim 0 : vector<120x6xf32>, i32 -> vector<120x6xf32>
    %cst = arith.constant 0.000000e+00 : f32
    %30 = vector.shape_cast %24 : vector<120x1xi1> to vector<120x1xi1>
    %31 = vector.broadcast %30 : vector<120x1xi1> to vector<120x6xi1>
    %32 = vector.broadcast %cst : f32 to vector<120x6xf32>
    %33 = arith.select %31, %32, %29 : vector<120x6xi1>, vector<120x6xf32>
    %c119_i32_6 = arith.constant 119 : i32
    %34 = tpu.dynamic_rotate %28 by %c119_i32_6 dim 0 : vector<120x6xf32>, i32 -> vector<120x6xf32>
    %cst_7 = arith.constant 0.000000e+00 : f32
    %35 = vector.shape_cast %27 : vector<120x1xi1> to vector<120x1xi1>
    %36 = vector.broadcast %35 : vector<120x1xi1> to vector<120x6xi1>
    %37 = vector.broadcast %cst_7 : f32 to vector<120x6xf32>
    %38 = arith.select %36, %37, %34 : vector<120x6xi1>, vector<120x6xf32>
    %c0_8 = arith.constant 0 : index
    %c0_9 = arith.constant 0 : index
    %39 = vector.load %arg1[%c0_8, %c0_9] : memref<80x32xf32, #tpu.memory_space<vmem>>, vector<6x16xf32>
    %cst_10 = arith.constant dense<0.000000e+00> : vector<120x16xf32>
    %40 = tpu.matmul %33, %39, %cst_10 {dimension_numbers = #tpu.dot_dimension_numbers<[1], [0], [0], [1], [0, 0, 1, 1], [], []>} : vector<120x6xf32>, vector<6x16xf32>, vector<120x16xf32> -> vector<120x16xf32>
    %c8 = arith.constant 8 : index
    %c0_11 = arith.constant 0 : index
    %41 = vector.load %arg1[%c8, %c0_11] : memref<80x32xf32, #tpu.memory_space<vmem>>, vector<6x16xf32>
    %cst_12 = arith.constant dense<0.000000e+00> : vector<120x16xf32>
    %42 = tpu.matmul %28, %41, %cst_12 {dimension_numbers = #tpu.dot_dimension_numbers<[1], [0], [0], [1], [0, 0, 1, 1], [], []>} : vector<120x6xf32>, vector<6x16xf32>, vector<120x16xf32> -> vector<120x16xf32>
    %43 = arith.addf %40, %42 : vector<120x16xf32>
    %c16 = arith.constant 16 : index
    %c0_13 = arith.constant 0 : index
    %44 = vector.load %arg1[%c16, %c0_13] : memref<80x32xf32, #tpu.memory_space<vmem>>, vector<6x16xf32>
    %cst_14 = arith.constant dense<0.000000e+00> : vector<120x16xf32>
    %45 = tpu.matmul %38, %44, %cst_14 {dimension_numbers = #tpu.dot_dimension_numbers<[1], [0], [0], [1], [0, 0, 1, 1], [], []>} : vector<120x6xf32>, vector<6x16xf32>, vector<120x16xf32> -> vector<120x16xf32>
    %46 = arith.addf %43, %45 : vector<120x16xf32>
    %cst_15 = arith.constant dense<0.000000e+00> : vector<16xf32>
    %47 = vector.multi_reduction <add>, %46, %cst_15 [0] : vector<120x16xf32> to vector<16xf32>
    %48 = vector.shape_cast %47 : vector<16xf32> to vector<1x16xf32>
    %cst_16 = arith.constant 1.200000e+02 : f32
    %49 = vector.broadcast %cst_16 : f32 to vector<1x16xf32>
    %50 = arith.divf %48, %49 : vector<1x16xf32>
    %51 = arith.mulf %46, %46 : vector<120x16xf32>
    %cst_17 = arith.constant dense<0.000000e+00> : vector<16xf32>
    %52 = vector.multi_reduction <add>, %51, %cst_17 [0] : vector<120x16xf32> to vector<16xf32>
    %53 = vector.shape_cast %52 : vector<16xf32> to vector<1x16xf32>
    %cst_18 = arith.constant 1.200000e+02 : f32
    %54 = vector.broadcast %cst_18 : f32 to vector<1x16xf32>
    %55 = arith.divf %53, %54 : vector<1x16xf32>
    %56 = arith.mulf %50, %50 : vector<1x16xf32>
    %57 = arith.subf %55, %56 : vector<1x16xf32>
    %cst_19 = arith.constant 9.99999974E-6 : f32
    %58 = vector.broadcast %cst_19 : f32 to vector<1x16xf32>
    %59 = arith.addf %57, %58 : vector<1x16xf32>
    %60 = math.rsqrt %59 : vector<1x16xf32>
    %61 = arith.mulf %0, %60 : vector<1x16xf32>
    %62 = vector.broadcast %61 : vector<1x16xf32> to vector<120x16xf32>
    %63 = arith.mulf %46, %62 : vector<120x16xf32>
    %64 = arith.mulf %50, %61 : vector<1x16xf32>
    %65 = arith.subf %1, %64 : vector<1x16xf32>
    %66 = vector.broadcast %65 : vector<1x16xf32> to vector<120x16xf32>
    %67 = arith.addf %63, %66 : vector<120x16xf32>
    %cst_20 = arith.constant 0.000000e+00 : f32
    %68 = vector.broadcast %cst_20 : f32 to vector<120x16xf32>
    %69 = arith.maximumf %67, %68 : vector<120x16xf32>
    %c1_i32_21 = arith.constant 1 : i32
    %70 = tpu.dynamic_rotate %69 by %c1_i32_21 dim 0 : vector<120x16xf32>, i32 -> vector<120x16xf32>
    %cst_22 = arith.constant 0.000000e+00 : f32
    %71 = vector.shape_cast %24 : vector<120x1xi1> to vector<120x1xi1>
    %72 = vector.broadcast %71 : vector<120x1xi1> to vector<120x16xi1>
    %73 = vector.broadcast %cst_22 : f32 to vector<120x16xf32>
    %74 = arith.select %72, %73, %70 : vector<120x16xi1>, vector<120x16xf32>
    %c119_i32_23 = arith.constant 119 : i32
    %75 = tpu.dynamic_rotate %69 by %c119_i32_23 dim 0 : vector<120x16xf32>, i32 -> vector<120x16xf32>
    %cst_24 = arith.constant 0.000000e+00 : f32
    %76 = vector.shape_cast %27 : vector<120x1xi1> to vector<120x1xi1>
    %77 = vector.broadcast %76 : vector<120x1xi1> to vector<120x16xi1>
    %78 = vector.broadcast %cst_24 : f32 to vector<120x16xf32>
    %79 = arith.select %77, %78, %75 : vector<120x16xi1>, vector<120x16xf32>
    %c24 = arith.constant 24 : index
    %c0_25 = arith.constant 0 : index
    %80 = vector.load %arg1[%c24, %c0_25] : memref<80x32xf32, #tpu.memory_space<vmem>>, vector<16x32xf32>
    %cst_26 = arith.constant dense<0.000000e+00> : vector<120x32xf32>
    %81 = tpu.matmul %74, %80, %cst_26 {dimension_numbers = #tpu.dot_dimension_numbers<[1], [0], [0], [1], [0, 0, 1, 1], [], []>} : vector<120x16xf32>, vector<16x32xf32>, vector<120x32xf32> -> vector<120x32xf32>
    %c40 = arith.constant 40 : index
    %c0_27 = arith.constant 0 : index
    %82 = vector.load %arg1[%c40, %c0_27] : memref<80x32xf32, #tpu.memory_space<vmem>>, vector<16x32xf32>
    %cst_28 = arith.constant dense<0.000000e+00> : vector<120x32xf32>
    %83 = tpu.matmul %69, %82, %cst_28 {dimension_numbers = #tpu.dot_dimension_numbers<[1], [0], [0], [1], [0, 0, 1, 1], [], []>} : vector<120x16xf32>, vector<16x32xf32>, vector<120x32xf32> -> vector<120x32xf32>
    %84 = arith.addf %81, %83 : vector<120x32xf32>
    %c56 = arith.constant 56 : index
    %c0_29 = arith.constant 0 : index
    %85 = vector.load %arg1[%c56, %c0_29] : memref<80x32xf32, #tpu.memory_space<vmem>>, vector<16x32xf32>
    %cst_30 = arith.constant dense<0.000000e+00> : vector<120x32xf32>
    %86 = tpu.matmul %79, %85, %cst_30 {dimension_numbers = #tpu.dot_dimension_numbers<[1], [0], [0], [1], [0, 0, 1, 1], [], []>} : vector<120x16xf32>, vector<16x32xf32>, vector<120x32xf32> -> vector<120x32xf32>
    %87 = arith.addf %84, %86 : vector<120x32xf32>
    %cst_31 = arith.constant dense<0.000000e+00> : vector<32xf32>
    %88 = vector.multi_reduction <add>, %87, %cst_31 [0] : vector<120x32xf32> to vector<32xf32>
    %89 = vector.shape_cast %88 : vector<32xf32> to vector<1x32xf32>
    %cst_32 = arith.constant 1.200000e+02 : f32
    %90 = vector.broadcast %cst_32 : f32 to vector<1x32xf32>
    %91 = arith.divf %89, %90 : vector<1x32xf32>
    %92 = arith.mulf %87, %87 : vector<120x32xf32>
    %cst_33 = arith.constant dense<0.000000e+00> : vector<32xf32>
    %93 = vector.multi_reduction <add>, %92, %cst_33 [0] : vector<120x32xf32> to vector<32xf32>
    %94 = vector.shape_cast %93 : vector<32xf32> to vector<1x32xf32>
    %cst_34 = arith.constant 1.200000e+02 : f32
    %95 = vector.broadcast %cst_34 : f32 to vector<1x32xf32>
    %96 = arith.divf %94, %95 : vector<1x32xf32>
    %97 = arith.mulf %91, %91 : vector<1x32xf32>
    %98 = arith.subf %96, %97 : vector<1x32xf32>
    %cst_35 = arith.constant 9.99999974E-6 : f32
    %99 = vector.broadcast %cst_35 : f32 to vector<1x32xf32>
    %100 = arith.addf %98, %99 : vector<1x32xf32>
    %101 = math.rsqrt %100 : vector<1x32xf32>
    %102 = arith.mulf %2, %101 : vector<1x32xf32>
    %103 = vector.broadcast %102 : vector<1x32xf32> to vector<120x32xf32>
    %104 = arith.mulf %87, %103 : vector<120x32xf32>
    %105 = arith.mulf %91, %102 : vector<1x32xf32>
    %106 = arith.subf %3, %105 : vector<1x32xf32>
    %107 = vector.broadcast %106 : vector<1x32xf32> to vector<120x32xf32>
    %108 = arith.addf %104, %107 : vector<120x32xf32>
    %cst_36 = arith.constant 0.000000e+00 : f32
    %109 = vector.broadcast %cst_36 : f32 to vector<120x32xf32>
    %110 = arith.maximumf %108, %109 : vector<120x32xf32>
    %111 = tpu.concatenate %110, %110 in 1 : vector<120x32xf32>, vector<120x32xf32> -> vector<120x64xf32>
    %c0_37 = arith.constant 0 : index
    %c0_38 = arith.constant 0 : index
    %112 = vector.load %arg2[%c0_37, %c0_38] : memref<120x64xf32, #tpu.memory_space<vmem>>, vector<120x64xf32>
    %113 = arith.mulf %111, %112 : vector<120x64xf32>
    %114 = tpu.iota {dimensions = array<i32: 0>} : vector<4x120xi32>
    %115 = tpu.iota {dimensions = array<i32: 1>} : vector<4x120xi32>
    %c30_i32_39 = arith.constant 30 : i32
    %116 = vector.broadcast %c30_i32_39 : i32 to vector<4x120xi32>
    %117 = arith.muli %114, %116 : vector<4x120xi32>
    %118 = arith.cmpi sge, %115, %117 : vector<4x120xi32>
    %c1_i32_40 = arith.constant 1 : i32
    %119 = vector.broadcast %c1_i32_40 : i32 to vector<4x120xi32>
    %120 = arith.addi %114, %119 : vector<4x120xi32>
    %c30_i32_41 = arith.constant 30 : i32
    %121 = vector.broadcast %c30_i32_41 : i32 to vector<4x120xi32>
    %122 = arith.muli %120, %121 : vector<4x120xi32>
    %123 = arith.cmpi slt, %115, %122 : vector<4x120xi32>
    %124 = arith.andi %118, %123 : vector<4x120xi1>
    %125 = arith.extui %124 : vector<4x120xi1> to vector<4x120xi32>
    %126 = arith.sitofp %125 : vector<4x120xi32> to vector<4x120xf32>
    %cst_42 = arith.constant dense<0.000000e+00> : vector<4x64xf32>
    %127 = tpu.matmul %126, %113, %cst_42 {dimension_numbers = #tpu.dot_dimension_numbers<[1], [0], [0], [1], [0, 0, 1, 1], [], []>} : vector<4x120xf32>, vector<120x64xf32>, vector<4x64xf32> -> vector<4x64xf32>
    %128 = tpu.iota {dimensions = array<i32: 0>} : vector<64x2xi32>
    %129 = tpu.iota {dimensions = array<i32: 1>} : vector<64x2xi32>
    %c32_i32 = arith.constant 32 : i32
    %130 = vector.broadcast %c32_i32 : i32 to vector<64x2xi32>
    %131 = arith.muli %129, %130 : vector<64x2xi32>
    %132 = arith.cmpi sge, %128, %131 : vector<64x2xi32>
    %c1_i32_43 = arith.constant 1 : i32
    %133 = vector.broadcast %c1_i32_43 : i32 to vector<64x2xi32>
    %134 = arith.addi %129, %133 : vector<64x2xi32>
    %c32_i32_44 = arith.constant 32 : i32
    %135 = vector.broadcast %c32_i32_44 : i32 to vector<64x2xi32>
    %136 = arith.muli %134, %135 : vector<64x2xi32>
    %137 = arith.cmpi slt, %128, %136 : vector<64x2xi32>
    %138 = arith.andi %132, %137 : vector<64x2xi1>
    %139 = arith.extui %138 : vector<64x2xi1> to vector<64x2xi32>
    %140 = arith.sitofp %139 : vector<64x2xi32> to vector<64x2xf32>
    %cst_45 = arith.constant dense<0.000000e+00> : vector<4x2xf32>
    %141 = tpu.matmul %127, %140, %cst_45 {dimension_numbers = #tpu.dot_dimension_numbers<[1], [0], [0], [1], [0, 0, 1, 1], [], []>} : vector<4x64xf32>, vector<64x2xf32>, vector<4x2xf32> -> vector<4x2xf32>
    %142 = vector.broadcast %4 : vector<1x2xf32> to vector<4x2xf32>
    %143 = arith.addf %141, %142 : vector<4x2xf32>
    %c0_46 = arith.constant 0 : index
    %c0_47 = arith.constant 0 : index
    %144 = vector.load %arg3[%c0_46, %c0_47] : memref<4x2xf32, #tpu.memory_space<vmem>>, vector<4x2xf32>
    tpu.vector_store %arg3[%c0_46, %c0_47], %143 {strides = array<i32>} : memref<4x2xf32, #tpu.memory_space<vmem>>, vector<4x2xf32>,
    return
  }
}

</mosaic_0001>

<llo_original>
// kernel: cnn_forward_pallas.1
$region0: #{cnn_forward_pallas.1}
  #allocation0 [shape = 'u32[]', space=smem, size = 0x4, offset = 0x4, fixed_abs, tag = 'smem constant byte address 0x4 - core index']
  #allocation1 [shape = 'u32[72,128]{1,0:T(1,128)}', space=vmem, size = 0x9000, scoped, tag = 'internal scratch']
  %s0 = inlined_call_operand.vmem [shape: f32[120,6], index: 0, kind: input, shape index: {}]
  %s1 = inlined_call_operand.vmem [shape: f32[80,32], index: 1, kind: input, shape index: {}]
  %s2 = inlined_call_operand.vmem [shape: f32[120,64], index: 2, kind: input, shape index: {}]
  %s3 = inlined_call_operand.vmem [shape: f32[4,2], index: 3, kind: output, shape index: {}]
  %s4 = sld [smem:[#allocation0]]
  $region22: #{cnn_forward_pallas.1} parent=0
    _
  %s6 = ssub.s32 1, %s4
  %s7 = scalar_select 0, %s6, %s4
  // Predicated region
  $region2: #{cnn_forward_pallas.1} parent=0 // pred_check
    _
  $region3: #{cnn_forward_pallas.1} parent=0 // pred_check_branch
    %9 = sbr.rel (0) target = $region5
  $region4: #{cnn_forward_pallas.1} parent=0 // pred_region
    _
  $region5: #{cnn_forward_pallas.1} parent=0 // pred_fallthru
    _
  // Predicated region
  $region6: #{cnn_forward_pallas.1} parent=0 // pred_check
    _
  $region7: #{cnn_forward_pallas.1} parent=0 // pred_check_branch
    %11 = sbr.rel (0) target = $region9
  $region8: #{cnn_forward_pallas.1} parent=0 // pred_region
    _
  $region9: #{cnn_forward_pallas.1} parent=0 // pred_fallthru
    _
  // Predicated region
  $region10: #{cnn_forward_pallas.1} parent=0 // pred_check
    _
  $region11: #{cnn_forward_pallas.1} parent=0 // pred_check_branch
    %13 = sbr.rel (0) target = $region13
  $region12: #{cnn_forward_pallas.1} parent=0 // pred_region
    _
  $region13: #{cnn_forward_pallas.1} parent=0 // pred_fallthru
    _
  %v14 = vld [vmem:[%s1 + $0x48] sm:$0x1]
  %v15 = vld [vmem:[%s1 + $0x49] sm:$0x1]
  %v16 = vld [vmem:[%s1 + $0x4a] sm:$0x1]
  %v17 = vld [vmem:[%s1 + $0x4b] sm:$0x1]
  %v18 = vld [vmem:[%s1 + $0x4c] sm:$0x1]
  %v19 = vlaneseq
  %v20 = vshrl.u32 %v19, 7
  %v21 = vadd.s32 %v20, 8
  %v22 = vadd.s32 %v20, 16
  %v23 = vadd.s32 %v20, 24
  %v24 = vadd.s32 %v20, 32
  %v25 = vadd.s32 %v20, 40
  %v26 = vadd.s32 %v20, 48
  %v27 = vadd.s32 %v20, 56
  %v28 = vadd.s32 %v20, 64
  %v29 = vadd.s32 %v20, 72
  %v30 = vadd.s32 %v20, 80
  %v31 = vadd.s32 %v20, 88
  %v32 = vadd.s32 %v20, 96
  %v33 = vadd.s32 %v20, 104
  %v34 = vadd.s32 %v20, 112
  %vm35 = vcmp.eq.s32.totalorder %v20, 0
  %vm36 = vcmp.eq.s32.totalorder %v21, 0
  %vm37 = vcmp.eq.s32.totalorder %v22, 0
  %vm38 = vcmp.eq.s32.totalorder %v23, 0
  %vm39 = vcmp.eq.s32.totalorder %v24, 0
  %vm40 = vcmp.eq.s32.totalorder %v25, 0
  %vm41 = vcmp.eq.s32.totalorder %v26, 0
  %vm42 = vcmp.eq.s32.totalorder %v27, 0
  %vm43 = vcmp.eq.s32.totalorder %v28, 0
  %vm44 = vcmp.eq.s32.totalorder %v29, 0
  %vm45 = vcmp.eq.s32.totalorder %v30, 0
  %vm46 = vcmp.eq.s32.totalorder %v31, 0
  %vm47 = vcmp.eq.s32.totalorder %v32, 0
  %vm48 = vcmp.eq.s32.totalorder %v33, 0
  %vm49 = vcmp.eq.s32.totalorder %v34, 0
  %vm50 = vcmp.eq.s32.totalorder %v20, 29
  %vm51 = vcmp.eq.s32.totalorder %v21, 29
  %vm52 = vcmp.eq.s32.totalorder %v22, 29
  %vm53 = vcmp.eq.s32.totalorder %v23, 29
  %vm54 = vcmp.eq.s32.totalorder %v24, 29
  %vm55 = vcmp.eq.s32.totalorder %v25, 29
  %vm56 = vcmp.eq.s32.totalorder %v26, 29
  %vm57 = vcmp.eq.s32.totalorder %v27, 29
  %vm58 = vcmp.eq.s32.totalorder %v28, 29
  %vm59 = vcmp.eq.s32.totalorder %v29, 29
  %vm60 = vcmp.eq.s32.totalorder %v30, 29
  %vm61 = vcmp.eq.s32.totalorder %v31, 29
  %vm62 = vcmp.eq.s32.totalorder %v32, 29
  %vm63 = vcmp.eq.s32.totalorder %v33, 29
  %vm64 = vcmp.eq.s32.totalorder %v34, 29
  %vm65 = vcmp.eq.s32.totalorder %v20, 30
  %vm66 = vcmp.eq.s32.totalorder %v21, 30
  %vm67 = vcmp.eq.s32.totalorder %v22, 30
  %vm68 = vcmp.eq.s32.totalorder %v23, 30
  %vm69 = vcmp.eq.s32.totalorder %v24, 30
  %vm70 = vcmp.eq.s32.totalorder %v25, 30
  %vm71 = vcmp.eq.s32.totalorder %v26, 30
  %vm72 = vcmp.eq.s32.totalorder %v27, 30
  %vm73 = vcmp.eq.s32.totalorder %v28, 30
  %vm74 = vcmp.eq.s32.totalorder %v29, 30
  %vm75 = vcmp.eq.s32.totalorder %v30, 30
  %vm76 = vcmp.eq.s32.totalorder %v31, 30
  %vm77 = vcmp.eq.s32.totalorder %v32, 30
  %vm78 = vcmp.eq.s32.totalorder %v33, 30
  %vm79 = vcmp.eq.s32.totalorder %v34, 30
  %vm80 = vmor %vm35, %vm65
  %vm81 = vmor %vm36, %vm66
  %vm82 = vmor %vm37, %vm67
  %vm83 = vmor %vm38, %vm68
  %vm84 = vmor %vm39, %vm69
  %vm85 = vmor %vm40, %vm70
  %vm86 = vmor %vm41, %vm71
  %vm87 = vmor %vm42, %vm72
  %vm88 = vmor %vm43, %vm73
  %vm89 = vmor %vm44, %vm74
  %vm90 = vmor %vm45, %vm75
  %vm91 = vmor %vm46, %vm76
  %vm92 = vmor %vm47, %vm77
  %vm93 = vmor %vm48, %vm78
  %vm94 = vmor %vm49, %vm79
  %vm95 = vcmp.eq.s32.totalorder %v20, 59
  %vm96 = vcmp.eq.s32.totalorder %v21, 59
  %vm97 = vcmp.eq.s32.totalorder %v22, 59
  %vm98 = vcmp.eq.s32.totalorder %v23, 59
  %vm99 = vcmp.eq.s32.totalorder %v24, 59
  %vm100 = vcmp.eq.s32.totalorder %v25, 59
  %vm101 = vcmp.eq.s32.totalorder %v26, 59
  %vm102 = vcmp.eq.s32.totalorder %v27, 59
  %vm103 = vcmp.eq.s32.totalorder %v28, 59
  %vm104 = vcmp.eq.s32.totalorder %v29, 59
  %vm105 = vcmp.eq.s32.totalorder %v30, 59
  %vm106 = vcmp.eq.s32.totalorder %v31, 59
  %vm107 = vcmp.eq.s32.totalorder %v32, 59
  %vm108 = vcmp.eq.s32.totalorder %v33, 59
  %vm109 = vcmp.eq.s32.totalorder %v34, 59
  %vm110 = vmor %vm50, %vm95
  %vm111 = vmor %vm51, %vm96
  %vm112 = vmor %vm52, %vm97
  %vm113 = vmor %vm53, %vm98
  %vm114 = vmor %vm54, %vm99
  %vm115 = vmor %vm55, %vm100
  %vm116 = vmor %vm56, %vm101
  %vm117 = vmor %vm57, %vm102
  %vm118 = vmor %vm58, %vm103
  %vm119 = vmor %vm59, %vm104
  %vm120 = vmor %vm60, %vm105
  %vm121 = vmor %vm61, %vm106
  %vm122 = vmor %vm62, %vm107
  %vm123 = vmor %vm63, %vm108
  %vm124 = vmor %vm64, %vm109
  %vm125 = vcmp.eq.s32.totalorder %v20, 60
  %vm126 = vcmp.eq.s32.totalorder %v21, 60
  %vm127 = vcmp.eq.s32.totalorder %v22, 60
  %vm128 = vcmp.eq.s32.totalorder %v23, 60
  %vm129 = vcmp.eq.s32.totalorder %v24, 60
  %vm130 = vcmp.eq.s32.totalorder %v25, 60
  %vm131 = vcmp.eq.s32.totalorder %v26, 60
  %vm132 = vcmp.eq.s32.totalorder %v27, 60
  %vm133 = vcmp.eq.s32.totalorder %v28, 60
  %vm134 = vcmp.eq.s32.totalorder %v29, 60
  %vm135 = vcmp.eq.s32.totalorder %v30, 60
  %vm136 = vcmp.eq.s32.totalorder %v31, 60
  %vm137 = vcmp.eq.s32.totalorder %v32, 60
  %vm138 = vcmp.eq.s32.totalorder %v33, 60
  %vm139 = vcmp.eq.s32.totalorder %v34, 60
  %vm140 = vmor %vm80, %vm125
  %vm141 = vmor %vm81, %vm126
  %vm142 = vmor %vm82, %vm127
  %vm143 = vmor %vm83, %vm128
  %vm144 = vmor %vm84, %vm129
  %vm145 = vmor %vm85, %vm130
  %vm146 = vmor %vm86, %vm131
  %vm147 = vmor %vm87, %vm132
  %vm148 = vmor %vm88, %vm133
  %vm149 = vmor %vm89, %vm134
  %vm150 = vmor %vm90, %vm135
  %vm151 = vmor %vm91, %vm136
  %vm152 = vmor %vm92, %vm137
  %vm153 = vmor %vm93, %vm138
  %vm154 = vmor %vm94, %vm139
  %vm155 = vcmp.eq.s32.totalorder %v20, 89
  %vm156 = vcmp.eq.s32.totalorder %v21, 89
  %vm157 = vcmp.eq.s32.totalorder %v22, 89
  %vm158 = vcmp.eq.s32.totalorder %v23, 89
  %vm159 = vcmp.eq.s32.totalorder %v24, 89
  %vm160 = vcmp.eq.s32.totalorder %v25, 89
  %vm161 = vcmp.eq.s32.totalorder %v26, 89
  %vm162 = vcmp.eq.s32.totalorder %v27, 89
  %vm163 = vcmp.eq.s32.totalorder %v28, 89
  %vm164 = vcmp.eq.s32.totalorder %v29, 89
  %vm165 = vcmp.eq.s32.totalorder %v30, 89
  %vm166 = vcmp.eq.s32.totalorder %v31, 89
  %vm167 = vcmp.eq.s32.totalorder %v32, 89
  %vm168 = vcmp.eq.s32.totalorder %v33, 89
  %vm169 = vcmp.eq.s32.totalorder %v34, 89
  %vm170 = vmor %vm110, %vm155
  %vm171 = vmor %vm111, %vm156
  %vm172 = vmor %vm112, %vm157
  %vm173 = vmor %vm113, %vm158
  %vm174 = vmor %vm114, %vm159
  %vm175 = vmor %vm115, %vm160
  %vm176 = vmor %vm116, %vm161
  %vm177 = vmor %vm117, %vm162
  %vm178 = vmor %vm118, %vm163
  %vm179 = vmor %vm119, %vm164
  %vm180 = vmor %vm120, %vm165
  %vm181 = vmor %vm121, %vm166
  %vm182 = vmor %vm122, %vm167
  %vm183 = vmor %vm123, %vm168
  %vm184 = vmor %vm124, %vm169
  %vm185 = vcmp.eq.s32.totalorder %v20, 90
  %vm186 = vcmp.eq.s32.totalorder %v21, 90
  %vm187 = vcmp.eq.s32.totalorder %v22, 90
  %vm188 = vcmp.eq.s32.totalorder %v23, 90
  %vm189 = vcmp.eq.s32.totalorder %v24, 90
  %vm190 = vcmp.eq.s32.totalorder %v25, 90
  %vm191 = vcmp.eq.s32.totalorder %v26, 90
  %vm192 = vcmp.eq.s32.totalorder %v27, 90
  %vm193 = vcmp.eq.s32.totalorder %v28, 90
  %vm194 = vcmp.eq.s32.totalorder %v29, 90
  %vm195 = vcmp.eq.s32.totalorder %v30, 90
  %vm196 = vcmp.eq.s32.totalorder %v31, 90
  %vm197 = vcmp.eq.s32.totalorder %v32, 90
  %vm198 = vcmp.eq.s32.totalorder %v33, 90
  %vm199 = vcmp.eq.s32.totalorder %v34, 90
  %vm200 = vmor %vm140, %vm185
  %vm201 = vmor %vm141, %vm186
  %vm202 = vmor %vm142, %vm187
  %vm203 = vmor %vm143, %vm188
  %vm204 = vmor %vm144, %vm189
  %vm205 = vmor %vm145, %vm190
  %vm206 = vmor %vm146, %vm191
  %vm207 = vmor %vm147, %vm192
  %vm208 = vmor %vm148, %vm193
  %vm209 = vmor %vm149, %vm194
  %vm210 = vmor %vm150, %vm195
  %vm211 = vmor %vm151, %vm196
  %vm212 = vmor %vm152, %vm197
  %vm213 = vmor %vm153, %vm198
  %vm214 = vmor %vm154, %vm199
  %vm215 = vcmp.eq.s32.totalorder %v20, 119
  %vm216 = vcmp.eq.s32.totalorder %v21, 119
  %vm217 = vcmp.eq.s32.totalorder %v22, 119
  %vm218 = vcmp.eq.s32.totalorder %v23, 119
  %vm219 = vcmp.eq.s32.totalorder %v24, 119
  %vm220 = vcmp.eq.s32.totalorder %v25, 119
  %vm221 = vcmp.eq.s32.totalorder %v26, 119
  %vm222 = vcmp.eq.s32.totalorder %v27, 119
  %vm223 = vcmp.eq.s32.totalorder %v28, 119
  %vm224 = vcmp.eq.s32.totalorder %v29, 119
  %vm225 = vcmp.eq.s32.totalorder %v30, 119
  %vm226 = vcmp.eq.s32.totalorder %v31, 119
  %vm227 = vcmp.eq.s32.totalorder %v32, 119
  %vm228 = vcmp.eq.s32.totalorder %v33, 119
  %vm229 = vcmp.eq.s32.totalorder %v34, 119
  %vm230 = vmor %vm170, %vm215
  %vm231 = vmor %vm171, %vm216
  %vm232 = vmor %vm172, %vm217
  %vm233 = vmor %vm173, %vm218
  %vm234 = vmor %vm174, %vm219
  %vm235 = vmor %vm175, %vm220
  %vm236 = vmor %vm176, %vm221
  %vm237 = vmor %vm177, %vm222
  %vm238 = vmor %vm178, %vm223
  %vm239 = vmor %vm179, %vm224
  %vm240 = vmor %vm180, %vm225
  %vm241 = vmor %vm181, %vm226
  %vm242 = vmor %vm182, %vm227
  %vm243 = vmor %vm183, %vm228
  %vm244 = vmor %vm184, %vm229
  %v245 = vld [vmem:[%s0] sm:$0xff]
  %v246 = vld [vmem:[%s0 + $0x8] sm:$0xff]
  %v247 = vld [vmem:[%s0 + $0x10] sm:$0xff]
  %v248 = vld [vmem:[%s0 + $0x18] sm:$0xff]
  %v249 = vld [vmem:[%s0 + $0x20] sm:$0xff]
  %v250 = vld [vmem:[%s0 + $0x28] sm:$0xff]
  %v251 = vld [vmem:[%s0 + $0x30] sm:$0xff]
  %v252 = vld [vmem:[%s0 + $0x38] sm:$0xff]
  %v253 = vld [vmem:[%s0 + $0x40] sm:$0xff]
  %v254 = vld [vmem:[%s0 + $0x48] sm:$0xff]
  %v255 = vld [vmem:[%s0 + $0x50] sm:$0xff]
  %v256 = vld [vmem:[%s0 + $0x58] sm:$0xff]
  %v257 = vld [vmem:[%s0 + $0x60] sm:$0xff]
  %v258 = vld [vmem:[%s0 + $0x68] sm:$0xff]
  %v259 = vld [vmem:[%s0 + $0x70] sm:$0xff]
  %v260 = vrot.slane %v245, 7
  %v261 = vrot.slane %v246, 7
  %v262 = vrot.slane %v247, 7
  %v263 = vrot.slane %v248, 7
  %v264 = vrot.slane %v249, 7
  %v265 = vrot.slane %v250, 7
  %v266 = vrot.slane %v251, 7
  %v267 = vrot.slane %v252, 7
  %v268 = vrot.slane %v253, 7
  %v269 = vrot.slane %v254, 7
  %v270 = vrot.slane %v255, 7
  %v271 = vrot.slane %v256, 7
  %v272 = vrot.slane %v257, 7
  %v273 = vrot.slane %v258, 7
  %v274 = vrot.slane %v259, 7
  %vm275 = vcmp.lt.s32.totalorder %v20, 1
  %v276 = vsel %vm275, %v273, %v274
  %v277 = vsel %vm275, %v272, %v273
  %v278 = vsel %vm275, %v271, %v272
  %v279 = vsel %vm275, %v270, %v271
  %v280 = vsel %vm275, %v269, %v270
  %v281 = vsel %vm275, %v268, %v269
  %v282 = vsel %vm275, %v267, %v268
  %v283 = vsel %vm275, %v266, %v267
  %v284 = vsel %vm275, %v265, %v266
  %v285 = vsel %vm275, %v264, %v265
  %v286 = vsel %vm275, %v263, %v264
  %v287 = vsel %vm275, %v262, %v263
  %v288 = vsel %vm275, %v261, %v262
  %v289 = vsel %vm275, %v260, %v261
  %v290 = vsel %vm275, %v274, %v260
  %v291 = vsel %vm200, 1, 0
  %v292 = vsel %vm201, 1, 0
  %v293 = vsel %vm202, 1, 0
  %v294 = vsel %vm203, 1, 0
  %v295 = vsel %vm204, 1, 0
  %v296 = vsel %vm205, 1, 0
  %v297 = vsel %vm206, 1, 0
  %v298 = vsel %vm207, 1, 0
  %v299 = vsel %vm208, 1, 0
  %v300 = vsel %vm209, 1, 0
  %v301 = vsel %vm210, 1, 0
  %v302 = vsel %vm211, 1, 0
  %v303 = vsel %vm212, 1, 0
  %v304 = vsel %vm213, 1, 0
  %v305 = vsel %vm214, 1, 0
  %vm306 = vcmp.eq.s32.totalorder %v291, 1
  %vm307 = vcmp.eq.s32.totalorder %v292, 1
  %vm308 = vcmp.eq.s32.totalorder %v293, 1
  %vm309 = vcmp.eq.s32.totalorder %v294, 1
  %vm310 = vcmp.eq.s32.totalorder %v295, 1
  %vm311 = vcmp.eq.s32.totalorder %v296, 1
  %vm312 = vcmp.eq.s32.totalorder %v297, 1
  %vm313 = vcmp.eq.s32.totalorder %v298, 1
  %vm314 = vcmp.eq.s32.totalorder %v299, 1
  %vm315 = vcmp.eq.s32.totalorder %v300, 1
  %vm316 = vcmp.eq.s32.totalorder %v301, 1
  %vm317 = vcmp.eq.s32.totalorder %v302, 1
  %vm318 = vcmp.eq.s32.totalorder %v303, 1
  %vm319 = vcmp.eq.s32.totalorder %v304, 1
  %vm320 = vcmp.eq.s32.totalorder %v305, 1
  %v321 = vsel %vm306, 0.0, %v290
  %v322 = vsel %vm307, 0.0, %v289
  %v323 = vsel %vm308, 0.0, %v288
  %v324 = vsel %vm309, 0.0, %v287
  %v325 = vsel %vm310, 0.0, %v286
  %v326 = vsel %vm311, 0.0, %v285
  %v327 = vsel %vm312, 0.0, %v284
  %v328 = vsel %vm313, 0.0, %v283
  %v329 = vsel %vm314, 0.0, %v282
  %v330 = vsel %vm315, 0.0, %v281
  %v331 = vsel %vm316, 0.0, %v280
  %v332 = vsel %vm317, 0.0, %v279
  %v333 = vsel %vm318, 0.0, %v278
  %v334 = vsel %vm319, 0.0, %v277
  %v335 = vsel %vm320, 0.0, %v276
  %v336 = vrot.slane %v245, 1
  %v337 = vrot.slane %v246, 1
  %v338 = vrot.slane %v247, 1
  %v339 = vrot.slane %v248, 1
  %v340 = vrot.slane %v249, 1
  %v341 = vrot.slane %v250, 1
  %v342 = vrot.slane %v251, 1
  %v343 = vrot.slane %v252, 1
  %v344 = vrot.slane %v253, 1
  %v345 = vrot.slane %v254, 1
  %v346 = vrot.slane %v255, 1
  %v347 = vrot.slane %v256, 1
  %v348 = vrot.slane %v257, 1
  %v349 = vrot.slane %v258, 1
  %v350 = vrot.slane %v259, 1
  %vm351 = vcmp.lt.s32.totalorder %v20, 7
  %v352 = vsel %vm351, %v349, %v350
  %v353 = vsel %vm351, %v348, %v349
  %v354 = vsel %vm351, %v347, %v348
  %v355 = vsel %vm351, %v346, %v347
  %v356 = vsel %vm351, %v345, %v346
  %v357 = vsel %vm351, %v344, %v345
  %v358 = vsel %vm351, %v343, %v344
  %v359 = vsel %vm351, %v342, %v343
  %v360 = vsel %vm351, %v341, %v342
  %v361 = vsel %vm351, %v340, %v341
  %v362 = vsel %vm351, %v339, %v340
  %v363 = vsel %vm351, %v338, %v339
  %v364 = vsel %vm351, %v337, %v338
  %v365 = vsel %vm351, %v336, %v337
  %v366 = vsel %vm351, %v350, %v336
  %v367 = vsel %vm230, 1, 0
  %v368 = vsel %vm231, 1, 0
  %v369 = vsel %vm232, 1, 0
  %v370 = vsel %vm233, 1, 0
  %v371 = vsel %vm234, 1, 0
  %v372 = vsel %vm235, 1, 0
  %v373 = vsel %vm236, 1, 0
  %v374 = vsel %vm237, 1, 0
  %v375 = vsel %vm238, 1, 0
  %v376 = vsel %vm239, 1, 0
  %v377 = vsel %vm240, 1, 0
  %v378 = vsel %vm241, 1, 0
  %v379 = vsel %vm242, 1, 0
  %v380 = vsel %vm243, 1, 0
  %v381 = vsel %vm244, 1, 0
  %vm382 = vcmp.eq.s32.totalorder %v367, 1
  %vm383 = vcmp.eq.s32.totalorder %v368, 1
  %vm384 = vcmp.eq.s32.totalorder %v369, 1
  %vm385 = vcmp.eq.s32.totalorder %v370, 1
  %vm386 = vcmp.eq.s32.totalorder %v371, 1
  %vm387 = vcmp.eq.s32.totalorder %v372, 1
  %vm388 = vcmp.eq.s32.totalorder %v373, 1
  %vm389 = vcmp.eq.s32.totalorder %v374, 1
  %vm390 = vcmp.eq.s32.totalorder %v375, 1
  %vm391 = vcmp.eq.s32.totalorder %v376, 1
  %vm392 = vcmp.eq.s32.totalorder %v377, 1
  %vm393 = vcmp.eq.s32.totalorder %v378, 1
  %vm394 = vcmp.eq.s32.totalorder %v379, 1
  %vm395 = vcmp.eq.s32.totalorder %v380, 1
  %vm396 = vcmp.eq.s32.totalorder %v381, 1
  %v397 = vsel %vm382, 0.0, %v365
  %v398 = vsel %vm383, 0.0, %v364
  %v399 = vsel %vm384, 0.0, %v363
  %v400 = vsel %vm385, 0.0, %v362
  %v401 = vsel %vm386, 0.0, %v361
  %v402 = vsel %vm387, 0.0, %v360
  %v403 = vsel %vm388, 0.0, %v359
  %v404 = vsel %vm389, 0.0, %v358
  %v405 = vsel %vm390, 0.0, %v357
  %v406 = vsel %vm391, 0.0, %v356
  %v407 = vsel %vm392, 0.0, %v355
  %v408 = vsel %vm393, 0.0, %v354
  %v409 = vsel %vm394, 0.0, %v353
  %v410 = vsel %vm395, 0.0, %v352
  %v411 = vsel %vm396, 0.0, %v366
  %v412 = vld [vmem:[%s1] sm:$0x3f]
  %v413 = vld [vmem:[%s1 + $0x8] sm:$0x3f]
  %vm414 = vcmask 48128
  %v416 = vsel %vm414, %v245, 0
  %v419 = vsel %vm414, %v246, 0
  %v422 = vsel %vm414, %v247, 0
  %v425 = vsel %vm414, %v248, 0
  %v428 = vsel %vm414, %v249, 0
  %v431 = vsel %vm414, %v250, 0
  %v434 = vsel %vm414, %v251, 0
  %v437 = vsel %vm414, %v252, 0
  %v440 = vsel %vm414, %v253, 0
  %v443 = vsel %vm414, %v254, 0
  %v446 = vsel %vm414, %v255, 0
  %v449 = vsel %vm414, %v256, 0
  %v452 = vsel %vm414, %v257, 0
  %v455 = vsel %vm414, %v258, 0
  %v458 = vsel %vm414, %v259, 0
  %vm460 = vcmask 1045504
  %v462 = vsel %vm460, %v413, 0
  %464 = vmatpush.msra.mxu0 0.0
  %465 = vmatpush.msra.mxu0 0.0
  %466 = vmatpush.msra.mxu0 0.0
  %467 = vmatpush.msra.mxu0 0.0
  %468 = vmatpush.msra.mxu0 0.0
  %469 = vmatpush.msra.mxu0 0.0
  %470 = vmatpush.msra.mxu0 0.0
  %471 = vmatpush.msra.mxu0 0.0
  %472 = vmatpush.msra.mxu0 0.0
  %473 = vmatpush.msra.mxu0 0.0
  %474 = vmatpush.msra.mxu0 0.0
  %475 = vmatpush.msra.mxu0 0.0
  %476 = vmatpush.msra.mxu0 0.0
  %477 = vmatpush.msra.mxu0 0.0
  %478 = vmatpush.msra.mxu0 0.0
  %479 = vmatpush.msra.mxu0 %v462
  %480 = vmatmul.f32.gmra.mxu0 %v416
  %v481 = vpop.f32.mrf.mxu0
  %v482 = vadd.f32 0.0, %v481
  %483 = vmatmul.f32.gmra.mxu0 %v419
  %v484 = vpop.f32.mrf.mxu0
  %v485 = vadd.f32 0.0, %v484
  %486 = vmatmul.f32.gmra.mxu0 %v422
  %v487 = vpop.f32.mrf.mxu0
  %v488 = vadd.f32 0.0, %v487
  %489 = vmatmul.f32.gmra.mxu0 %v425
  %v490 = vpop.f32.mrf.mxu0
  %v491 = vadd.f32 0.0, %v490
  %492 = vmatmul.f32.gmra.mxu0 %v428
  %v493 = vpop.f32.mrf.mxu0
  %v494 = vadd.f32 0.0, %v493
  %495 = vmatmul.f32.gmra.mxu0 %v431
  %v496 = vpop.f32.mrf.mxu0
  %v497 = vadd.f32 0.0, %v496
  %498 = vmatmul.f32.gmra.mxu0 %v434
  %v499 = vpop.f32.mrf.mxu0
  %v500 = vadd.f32 0.0, %v499
  %501 = vmatmul.f32.gmra.mxu0 %v437
  %v502 = vpop.f32.mrf.mxu0
  %v503 = vadd.f32 0.0, %v502
  %504 = vmatmul.f32.gmra.mxu0 %v440
  %v505 = vpop.f32.mrf.mxu0
  %v506 = vadd.f32 0.0, %v505
  %507 = vmatmul.f32.gmra.mxu0 %v443
  %v508 = vpop.f32.mrf.mxu0
  %v509 = vadd.f32 0.0, %v508
  %510 = vmatmul.f32.gmra.mxu0 %v446
  %v511 = vpop.f32.mrf.mxu0
  %v512 = vadd.f32 0.0, %v511
  %513 = vmatmul.f32.gmra.mxu0 %v449
  %v514 = vpop.f32.mrf.mxu0
  %v515 = vadd.f32 0.0, %v514
  %516 = vmatmul.f32.gmra.mxu0 %v452
  %v517 = vpop.f32.mrf.mxu0
  %v518 = vadd.f32 0.0, %v517
  %519 = vmatmul.f32.gmra.mxu0 %v455
  %v520 = vpop.f32.mrf.mxu0
  %v521 = vadd.f32 0.0, %v520
  %522 = vmatmul.f32.gmra.mxu0 %v458
  %v523 = vpop.f32.mrf.mxu0
  %v524 = vadd.f32 0.0, %v523
  %525 = vdwg.mxu0
  %v527 = vsel %vm414, %v321, 0
  %v530 = vsel %vm414, %v322, 0
  %v533 = vsel %vm414, %v323, 0
  %v536 = vsel %vm414, %v324, 0
  %v539 = vsel %vm414, %v325, 0
  %v542 = vsel %vm414, %v326, 0
  %v545 = vsel %vm414, %v327, 0
  %v548 = vsel %vm414, %v328, 0
  %v551 = vsel %vm414, %v329, 0
  %v554 = vsel %vm414, %v330, 0
  %v557 = vsel %vm414, %v331, 0
  %v560 = vsel %vm414, %v332, 0
  %v563 = vsel %vm414, %v333, 0
  %v566 = vsel %vm414, %v334, 0
  %v569 = vsel %vm414, %v335, 0
  %v572 = vsel %vm460, %v412, 0
  %574 = vmatpush.msra.mxu0 0.0
  %575 = vmatpush.msra.mxu0 0.0
  %576 = vmatpush.msra.mxu0 0.0
  %577 = vmatpush.msra.mxu0 0.0
  %578 = vmatpush.msra.mxu0 0.0
  %579 = vmatpush.msra.mxu0 0.0
  %580 = vmatpush.msra.mxu0 0.0
  %581 = vmatpush.msra.mxu0 0.0
  %582 = vmatpush.msra.mxu0 0.0
  %583 = vmatpush.msra.mxu0 0.0
  %584 = vmatpush.msra.mxu0 0.0
  %585 = vmatpush.msra.mxu0 0.0
  %586 = vmatpush.msra.mxu0 0.0
  %587 = vmatpush.msra.mxu0 0.0
  %588 = vmatpush.msra.mxu0 0.0
  %589 = vmatpush.msra.mxu0 %v572
  %590 = vmatmul.f32.gmra.mxu0 %v527
  %v591 = vpop.f32.mrf.mxu0
  %v592 = vadd.f32 %v482, %v591
  %593 = vmatmul.f32.gmra.mxu0 %v530
  %v594 = vpop.f32.mrf.mxu0
  %v595 = vadd.f32 %v485, %v594
  %596 = vmatmul.f32.gmra.mxu0 %v533
  %v597 = vpop.f32.mrf.mxu0
  %v598 = vadd.f32 %v488, %v597
  %599 = vmatmul.f32.gmra.mxu0 %v536
  %v600 = vpop.f32.mrf.mxu0
  %v601 = vadd.f32 %v491, %v600
  %602 = vmatmul.f32.gmra.mxu0 %v539
  %v603 = vpop.f32.mrf.mxu0
  %v604 = vadd.f32 %v494, %v603
  %605 = vmatmul.f32.gmra.mxu0 %v542
  %v606 = vpop.f32.mrf.mxu0
  %v607 = vadd.f32 %v497, %v606
  %608 = vmatmul.f32.gmra.mxu0 %v545
  %v609 = vpop.f32.mrf.mxu0
  %v610 = vadd.f32 %v500, %v609
  %611 = vmatmul.f32.gmra.mxu0 %v548
  %v612 = vpop.f32.mrf.mxu0
  %v613 = vadd.f32 %v503, %v612
  %614 = vmatmul.f32.gmra.mxu0 %v551
  %v615 = vpop.f32.mrf.mxu0
  %v616 = vadd.f32 %v506, %v615
  %617 = vmatmul.f32.gmra.mxu0 %v554
  %v618 = vpop.f32.mrf.mxu0
  %v619 = vadd.f32 %v509, %v618
  %620 = vmatmul.f32.gmra.mxu0 %v557
  %v621 = vpop.f32.mrf.mxu0
  %v622 = vadd.f32 %v512, %v621
  %623 = vmatmul.f32.gmra.mxu0 %v560
  %v624 = vpop.f32.mrf.mxu0
  %v625 = vadd.f32 %v515, %v624
  %626 = vmatmul.f32.gmra.mxu0 %v563
  %v627 = vpop.f32.mrf.mxu0
  %v628 = vadd.f32 %v518, %v627
  %629 = vmatmul.f32.gmra.mxu0 %v566
  %v630 = vpop.f32.mrf.mxu0
  %v631 = vadd.f32 %v521, %v630
  %632 = vmatmul.f32.gmra.mxu0 %v569
  %v633 = vpop.f32.mrf.mxu0
  %v634 = vadd.f32 %v524, %v633
  %635 = vdwg.mxu0
  %v636 = vld [vmem:[%s1 + $0x10] sm:$0x3f]
  %v638 = vsel %vm414, %v397, 0
  %v641 = vsel %vm414, %v398, 0
  %v644 = vsel %vm414, %v399, 0
  %v647 = vsel %vm414, %v400, 0
  %v650 = vsel %vm414, %v401, 0
  %v653 = vsel %vm414, %v402, 0
  %v656 = vsel %vm414, %v403, 0
  %v659 = vsel %vm414, %v404, 0
  %v662 = vsel %vm414, %v405, 0
  %v665 = vsel %vm414, %v406, 0
  %v668 = vsel %vm414, %v407, 0
  %v671 = vsel %vm414, %v408, 0
  %v674 = vsel %vm414, %v409, 0
  %v677 = vsel %vm414, %v410, 0
  %v680 = vsel %vm414, %v411, 0
  %v683 = vsel %vm460, %v636, 0
  %685 = vmatpush.msra.mxu0 0.0
  %686 = vmatpush.msra.mxu0 0.0
  %687 = vmatpush.msra.mxu0 0.0
  %688 = vmatpush.msra.mxu0 0.0
  %689 = vmatpush.msra.mxu0 0.0
  %690 = vmatpush.msra.mxu0 0.0
  %691 = vmatpush.msra.mxu0 0.0
  %692 = vmatpush.msra.mxu0 0.0
  %693 = vmatpush.msra.mxu0 0.0
  %694 = vmatpush.msra.mxu0 0.0
  %695 = vmatpush.msra.mxu0 0.0
  %696 = vmatpush.msra.mxu0 0.0
  %697 = vmatpush.msra.mxu0 0.0
  %698 = vmatpush.msra.mxu0 0.0
  %699 = vmatpush.msra.mxu0 0.0
  %700 = vmatpush.msra.mxu0 %v683
  %701 = vmatmul.f32.gmra.mxu0 %v638
  %v702 = vpop.f32.mrf.mxu0
  %v703 = vadd.f32 0.0, %v702
  %704 = vmatmul.f32.gmra.mxu0 %v641
  %v705 = vpop.f32.mrf.mxu0
  %v706 = vadd.f32 0.0, %v705
  %707 = vmatmul.f32.gmra.mxu0 %v644
  %v708 = vpop.f32.mrf.mxu0
  %v709 = vadd.f32 0.0, %v708
  %710 = vmatmul.f32.gmra.mxu0 %v647
  %v711 = vpop.f32.mrf.mxu0
  %v712 = vadd.f32 0.0, %v711
  %713 = vmatmul.f32.gmra.mxu0 %v650
  %v714 = vpop.f32.mrf.mxu0
  %v715 = vadd.f32 0.0, %v714
  %716 = vmatmul.f32.gmra.mxu0 %v653
  %v717 = vpop.f32.mrf.mxu0
  %v718 = vadd.f32 0.0, %v717
  %719 = vmatmul.f32.gmra.mxu0 %v656
  %v720 = vpop.f32.mrf.mxu0
  %v721 = vadd.f32 0.0, %v720
  %722 = vmatmul.f32.gmra.mxu0 %v659
  %v723 = vpop.f32.mrf.mxu0
  %v724 = vadd.f32 0.0, %v723
  %725 = vmatmul.f32.gmra.mxu0 %v662
  %v726 = vpop.f32.mrf.mxu0
  %v727 = vadd.f32 0.0, %v726
  %728 = vmatmul.f32.gmra.mxu0 %v665
  %v729 = vpop.f32.mrf.mxu0
  %v730 = vadd.f32 0.0, %v729
  %731 = vmatmul.f32.gmra.mxu0 %v668
  %v732 = vpop.f32.mrf.mxu0
  %v733 = vadd.f32 0.0, %v732
  %734 = vmatmul.f32.gmra.mxu0 %v671
  %v735 = vpop.f32.mrf.mxu0
  %v736 = vadd.f32 0.0, %v735
  %737 = vmatmul.f32.gmra.mxu0 %v674
  %v738 = vpop.f32.mrf.mxu0
  %v739 = vadd.f32 0.0, %v738
  %740 = vmatmul.f32.gmra.mxu0 %v677
  %v741 = vpop.f32.mrf.mxu0
  %v742 = vadd.f32 0.0, %v741
  %743 = vmatmul.f32.gmra.mxu0 %v680
  %v744 = vpop.f32.mrf.mxu0
  %v745 = vadd.f32 0.0, %v744
  %746 = vdwg.mxu0
  %v747 = vadd.f32 %v592, %v703
  %v748 = vadd.f32 %v595, %v706
  %v749 = vadd.f32 %v598, %v709
  %v750 = vadd.f32 %v601, %v712
  %v751 = vadd.f32 %v604, %v715
  %v752 = vadd.f32 %v607, %v718
  %v753 = vadd.f32 %v610, %v721
  %v754 = vadd.f32 %v613, %v724
  %v755 = vadd.f32 %v616, %v727
  %v756 = vadd.f32 %v619, %v730
  %v757 = vadd.f32 %v622, %v733
  %v758 = vadd.f32 %v625, %v736
  %v759 = vadd.f32 %v628, %v739
  %v760 = vadd.f32 %v631, %v742
  %v761 = vadd.f32 %v634, %v745
  %vm762 = vcmask 130048
  %v763 = vsel %vm762, %v747, 0.0
  %v764 = vsel %vm762, %v748, 0.0
  %v765 = vadd.f32 %v763, %v764
  %v766 = vsel %vm762, %v749, 0.0
  %v767 = vadd.f32 %v765, %v766
  %v768 = vsel %vm762, %v750, 0.0
  %v769 = vadd.f32 %v767, %v768
  %v770 = vsel %vm762, %v751, 0.0
  %v771 = vadd.f32 %v769, %v770
  %v772 = vsel %vm762, %v752, 0.0
  %v773 = vadd.f32 %v771, %v772
  %v774 = vsel %vm762, %v753, 0.0
  %v775 = vadd.f32 %v773, %v774
  %v776 = vsel %vm762, %v754, 0.0
  %v777 = vadd.f32 %v775, %v776
  %v778 = vsel %vm762, %v755, 0.0
  %v779 = vadd.f32 %v777, %v778
  %v780 = vsel %vm762, %v756, 0.0
  %v781 = vadd.f32 %v779, %v780
  %v782 = vsel %vm762, %v757, 0.0
  %v783 = vadd.f32 %v781, %v782
  %v784 = vsel %vm762, %v758, 0.0
  %v785 = vadd.f32 %v783, %v784
  %v786 = vsel %vm762, %v759, 0.0
  %v787 = vadd.f32 %v785, %v786
  %v788 = vsel %vm762, %v760, 0.0
  %v789 = vadd.f32 %v787, %v788
  %v790 = vsel %vm762, %v761, 0.0
  %v791 = vadd.f32 %v789, %v790
  %v792 = vrot.slane %v791, 4
  %v793 = vadd.f32 %v791, %v792
  %v794 = vrot.slane %v793, 2
  %v795 = vadd.f32 %v793, %v794
  %v796 = vrot.slane %v795, 1
  %v797 = vadd.f32 %v795, %v796
  %v798 = vrcp.pop 120.0
  %v799 = vmul.f32 120.0, %v798
  %v800 = vsub.f32 1.0, %v799
  %v801 = vmul.f32 %v798, %v800
  %v802 = vadd.f32 %v798, %v801
  %vm803 = vweird.f32 %v798
  %v804 = vsel %vm803, %v798, %v802
  %v805 = vmul.f32 %v797, %v804
  %v806 = vmul.f32 %v747, %v747
  %v807 = vmul.f32 %v748, %v748
  %v808 = vmul.f32 %v749, %v749
  %v809 = vmul.f32 %v750, %v750
  %v810 = vmul.f32 %v751, %v751
  %v811 = vmul.f32 %v752, %v752
  %v812 = vmul.f32 %v753, %v753
  %v813 = vmul.f32 %v754, %v754
  %v814 = vmul.f32 %v755, %v755
  %v815 = vmul.f32 %v756, %v756
  %v816 = vmul.f32 %v757, %v757
  %v817 = vmul.f32 %v758, %v758
  %v818 = vmul.f32 %v759, %v759
  %v819 = vmul.f32 %v760, %v760
  %v820 = vmul.f32 %v761, %v761
  %v821 = vsel %vm762, %v806, 0.0
  %v822 = vsel %vm762, %v807, 0.0
  %v823 = vadd.f32 %v821, %v822
  %v824 = vsel %vm762, %v808, 0.0
  %v825 = vadd.f32 %v823, %v824
  %v826 = vsel %vm762, %v809, 0.0
  %v827 = vadd.f32 %v825, %v826
  %v828 = vsel %vm762, %v810, 0.0
  %v829 = vadd.f32 %v827, %v828
  %v830 = vsel %vm762, %v811, 0.0
  %v831 = vadd.f32 %v829, %v830
  %v832 = vsel %vm762, %v812, 0.0
  %v833 = vadd.f32 %v831, %v832
  %v834 = vsel %vm762, %v813, 0.0
  %v835 = vadd.f32 %v833, %v834
  %v836 = vsel %vm762, %v814, 0.0
  %v837 = vadd.f32 %v835, %v836
  %v838 = vsel %vm762, %v815, 0.0
  %v839 = vadd.f32 %v837, %v838
  %v840 = vsel %vm762, %v816, 0.0
  %v841 = vadd.f32 %v839, %v840
  %v842 = vsel %vm762, %v817, 0.0
  %v843 = vadd.f32 %v841, %v842
  %v844 = vsel %vm762, %v818, 0.0
  %v845 = vadd.f32 %v843, %v844
  %v846 = vsel %vm762, %v819, 0.0
  %v847 = vadd.f32 %v845, %v846
  %v848 = vsel %vm762, %v820, 0.0
  %v849 = vadd.f32 %v847, %v848
  %v850 = vrot.slane %v849, 4
  %v851 = vadd.f32 %v849, %v850
  %v852 = vrot.slane %v851, 2
  %v853 = vadd.f32 %v851, %v852
  %v854 = vrot.slane %v853, 1
  %v855 = vadd.f32 %v853, %v854
  %v856 = vmul.f32 %v855, %v804
  %v857 = vmul.f32 %v805, %v805
  %v858 = vsub.f32 %v856, %v857
  %v859 = vadd.f32 %v858, 1e-05
  %v860 = vrsqrt.pop %v859
  %v861 = vmul.f32 %v860, %v859
  %v862 = vmul.f32 %v861, %v860
  %v863 = vmul.f32 0.5, %v862
  %v864 = vsub.f32 1.5, %v863
  %v865 = vmul.f32 %v860, %v864
  %vm866 = vweird.f32 %v859
  %vm867 = vweird.f32 %v860
  %vm868 = vmor %vm866, %vm867
  %v869 = vsel %vm868, %v860, %v865
  %v870 = vmul.f32 %v14, %v869
  %v871 = vperm.slane %v870, 0
  %v872 = vmul.f32 %v747, %v871
  %v873 = vmul.f32 %v748, %v871
  %v874 = vmul.f32 %v749, %v871
  %v875 = vmul.f32 %v750, %v871
  %v876 = vmul.f32 %v751, %v871
  %v877 = vmul.f32 %v752, %v871
  %v878 = vmul.f32 %v753, %v871
  %v879 = vmul.f32 %v754, %v871
  %v880 = vmul.f32 %v755, %v871
  %v881 = vmul.f32 %v756, %v871
  %v882 = vmul.f32 %v757, %v871
  %v883 = vmul.f32 %v758, %v871
  %v884 = vmul.f32 %v759, %v871
  %v885 = vmul.f32 %v760, %v871
  %v886 = vmul.f32 %v761, %v871
  %v887 = vmul.f32 %v805, %v870
  %v888 = vsub.f32 %v15, %v887
  %v889 = vperm.slane %v888, 0
  %v890 = vadd.f32 %v872, %v889
  %v891 = vadd.f32 %v873, %v889
  %v892 = vadd.f32 %v874, %v889
  %v893 = vadd.f32 %v875, %v889
  %v894 = vadd.f32 %v876, %v889
  %v895 = vadd.f32 %v877, %v889
  %v896 = vadd.f32 %v878, %v889
  %v897 = vadd.f32 %v879, %v889
  %v898 = vadd.f32 %v880, %v889
  %v899 = vadd.f32 %v881, %v889
  %v900 = vadd.f32 %v882, %v889
  %v901 = vadd.f32 %v883, %v889
  %v902 = vadd.f32 %v884, %v889
  %v903 = vadd.f32 %v885, %v889
  %v904 = vadd.f32 %v886, %v889
  %v905 = vmax.f32 %v890, 0.0
  %v906 = vmax.f32 %v891, 0.0
  %v907 = vmax.f32 %v892, 0.0
  %v908 = vmax.f32 %v893, 0.0
  %v909 = vmax.f32 %v894, 0.0
  %v910 = vmax.f32 %v895, 0.0
  %v911 = vmax.f32 %v896, 0.0
  %v912 = vmax.f32 %v897, 0.0
  %v913 = vmax.f32 %v898, 0.0
  %v914 = vmax.f32 %v899, 0.0
  %v915 = vmax.f32 %v900, 0.0
  %v916 = vmax.f32 %v901, 0.0
  %v917 = vmax.f32 %v902, 0.0
  %v918 = vmax.f32 %v903, 0.0
  %v919 = vmax.f32 %v904, 0.0
  %v920 = vrot.slane %v905, 7
  %v921 = vrot.slane %v906, 7
  %v922 = vrot.slane %v907, 7
  %v923 = vrot.slane %v908, 7
  %v924 = vrot.slane %v909, 7
  %v925 = vrot.slane %v910, 7
  %v926 = vrot.slane %v911, 7
  %v927 = vrot.slane %v912, 7
  %v928 = vrot.slane %v913, 7
  %v929 = vrot.slane %v914, 7
  %v930 = vrot.slane %v915, 7
  %v931 = vrot.slane %v916, 7
  %v932 = vrot.slane %v917, 7
  %v933 = vrot.slane %v918, 7
  %v934 = vrot.slane %v919, 7
  %v935 = vsel %vm275, %v933, %v934
  %v936 = vsel %vm275, %v932, %v933
  %v937 = vsel %vm275, %v931, %v932
  %v938 = vsel %vm275, %v930, %v931
  %v939 = vsel %vm275, %v929, %v930
  %v940 = vsel %vm275, %v928, %v929
  %v941 = vsel %vm275, %v927, %v928
  %v942 = vsel %vm275, %v926, %v927
  %v943 = vsel %vm275, %v925, %v926
  %v944 = vsel %vm275, %v924, %v925
  %v945 = vsel %vm275, %v923, %v924
  %v946 = vsel %vm275, %v922, %v923
  %v947 = vsel %vm275, %v921, %v922
  %v948 = vsel %vm275, %v920, %v921
  %v949 = vsel %vm275, %v934, %v920
  %v950 = vsel %vm306, 0.0, %v949
  %v951 = vsel %vm307, 0.0, %v948
  %v952 = vsel %vm308, 0.0, %v947
  %v953 = vsel %vm309, 0.0, %v946
  %v954 = vsel %vm310, 0.0, %v945
  %v955 = vsel %vm311, 0.0, %v944
  %v956 = vsel %vm312, 0.0, %v943
  %v957 = vsel %vm313, 0.0, %v942
  %v958 = vsel %vm314, 0.0, %v941
  %v959 = vsel %vm315, 0.0, %v940
  %v960 = vsel %vm316, 0.0, %v939
  %v961 = vsel %vm317, 0.0, %v938
  %v962 = vsel %vm318, 0.0, %v937
  %v963 = vsel %vm319, 0.0, %v936
  %v964 = vsel %vm320, 0.0, %v935
  %v965 = vrot.slane %v905, 1
  %v966 = vrot.slane %v906, 1
  %v967 = vrot.slane %v907, 1
  %v968 = vrot.slane %v908, 1
  %v969 = vrot.slane %v909, 1
  %v970 = vrot.slane %v910, 1
  %v971 = vrot.slane %v911, 1
  %v972 = vrot.slane %v912, 1
  %v973 = vrot.slane %v913, 1
  %v974 = vrot.slane %v914, 1
  %v975 = vrot.slane %v915, 1
  %v976 = vrot.slane %v916, 1
  %v977 = vrot.slane %v917, 1
  %v978 = vrot.slane %v918, 1
  %v979 = vrot.slane %v919, 1
  %v980 = vsel %vm351, %v978, %v979
  %v981 = vsel %vm351, %v977, %v978
  %v982 = vsel %vm351, %v976, %v977
  %v983 = vsel %vm351, %v975, %v976
  %v984 = vsel %vm351, %v974, %v975
  %v985 = vsel %vm351, %v973, %v974
  %v986 = vsel %vm351, %v972, %v973
  %v987 = vsel %vm351, %v971, %v972
  %v988 = vsel %vm351, %v970, %v971
  %v989 = vsel %vm351, %v969, %v970
  %v990 = vsel %vm351, %v968, %v969
  %v991 = vsel %vm351, %v967, %v968
  %v992 = vsel %vm351, %v966, %v967
  %v993 = vsel %vm351, %v965, %v966
  %v994 = vsel %vm351, %v979, %v965
  %v995 = vsel %vm382, 0.0, %v993
  %v996 = vsel %vm383, 0.0, %v992
  %v997 = vsel %vm384, 0.0, %v991
  %v998 = vsel %vm385, 0.0, %v990
  %v999 = vsel %vm386, 0.0, %v989
  %v1000 = vsel %vm387, 0.0, %v988
  %v1001 = vsel %vm388, 0.0, %v987
  %v1002 = vsel %vm389, 0.0, %v986
  %v1003 = vsel %vm390, 0.0, %v985
  %v1004 = vsel %vm391, 0.0, %v984
  %v1005 = vsel %vm392, 0.0, %v983
  %v1006 = vsel %vm393, 0.0, %v982
  %v1007 = vsel %vm394, 0.0, %v981
  %v1008 = vsel %vm395, 0.0, %v980
  %v1009 = vsel %vm396, 0.0, %v994
  %v1010 = vld [vmem:[%s1 + $0x18] sm:$0xff]
  %v1011 = vld [vmem:[%s1 + $0x20] sm:$0xff]
  %v1012 = vld [vmem:[%s1 + $0x28] sm:$0xff]
  %v1013 = vld [vmem:[%s1 + $0x30] sm:$0xff]
  %v1015 = vsel %vm762, %v905, 0
  %v1018 = vsel %vm762, %v906, 0
  %v1021 = vsel %vm762, %v907, 0
  %v1024 = vsel %vm762, %v908, 0
  %v1027 = vsel %vm762, %v909, 0
  %v1030 = vsel %vm762, %v910, 0
  %v1033 = vsel %vm762, %v911, 0
  %v1036 = vsel %vm762, %v912, 0
  %v1039 = vsel %vm762, %v913, 0
  %v1042 = vsel %vm762, %v914, 0
  %v1045 = vsel %vm762, %v915, 0
  %v1048 = vsel %vm762, %v916, 0
  %v1051 = vsel %vm762, %v917, 0
  %v1054 = vsel %vm762, %v918, 0
  %v1057 = vsel %vm762, %v919, 0
  %1059 = vmatpush.msra.mxu0 0.0
  %1060 = vmatpush.msra.mxu0 0.0
  %1061 = vmatpush.msra.mxu0 0.0
  %1062 = vmatpush.msra.mxu0 0.0
  %1063 = vmatpush.msra.mxu0 0.0
  %1064 = vmatpush.msra.mxu0 0.0
  %1065 = vmatpush.msra.mxu0 0.0
  %1066 = vmatpush.msra.mxu0 0.0
  %1067 = vmatpush.msra.mxu0 0.0
  %1068 = vmatpush.msra.mxu0 0.0
  %1069 = vmatpush.msra.mxu0 0.0
  %1070 = vmatpush.msra.mxu0 0.0
  %1071 = vmatpush.msra.mxu0 0.0
  %1072 = vmatpush.msra.mxu0 0.0
  %1073 = vmatpush.msra.mxu0 %v1013
  %1074 = vmatpush.msra.mxu0 %v1012
  %1075 = vmatmul.f32.gmra.mxu0 %v1015
  %v1076 = vpop.f32.mrf.mxu0
  %v1077 = vadd.f32 0.0, %v1076
  %1078 = vmatmul.f32.gmra.mxu0 %v1018
  %v1079 = vpop.f32.mrf.mxu0
  %v1080 = vadd.f32 0.0, %v1079
  %1081 = vmatmul.f32.gmra.mxu0 %v1021
  %v1082 = vpop.f32.mrf.mxu0
  %v1083 = vadd.f32 0.0, %v1082
  %1084 = vmatmul.f32.gmra.mxu0 %v1024
  %v1085 = vpop.f32.mrf.mxu0
  %v1086 = vadd.f32 0.0, %v1085
  %1087 = vmatmul.f32.gmra.mxu0 %v1027
  %v1088 = vpop.f32.mrf.mxu0
  %v1089 = vadd.f32 0.0, %v1088
  %1090 = vmatmul.f32.gmra.mxu0 %v1030
  %v1091 = vpop.f32.mrf.mxu0
  %v1092 = vadd.f32 0.0, %v1091
  %1093 = vmatmul.f32.gmra.mxu0 %v1033
  %v1094 = vpop.f32.mrf.mxu0
  %v1095 = vadd.f32 0.0, %v1094
  %1096 = vmatmul.f32.gmra.mxu0 %v1036
  %v1097 = vpop.f32.mrf.mxu0
  %v1098 = vadd.f32 0.0, %v1097
  %1099 = vmatmul.f32.gmra.mxu0 %v1039
  %v1100 = vpop.f32.mrf.mxu0
  %v1101 = vadd.f32 0.0, %v1100
  %1102 = vmatmul.f32.gmra.mxu0 %v1042
  %v1103 = vpop.f32.mrf.mxu0
  %v1104 = vadd.f32 0.0, %v1103
  %1105 = vmatmul.f32.gmra.mxu0 %v1045
  %v1106 = vpop.f32.mrf.mxu0
  %v1107 = vadd.f32 0.0, %v1106
  %1108 = vmatmul.f32.gmra.mxu0 %v1048
  %v1109 = vpop.f32.mrf.mxu0
  %v1110 = vadd.f32 0.0, %v1109
  %1111 = vmatmul.f32.gmra.mxu0 %v1051
  %v1112 = vpop.f32.mrf.mxu0
  %v1113 = vadd.f32 0.0, %v1112
  %1114 = vmatmul.f32.gmra.mxu0 %v1054
  %v1115 = vpop.f32.mrf.mxu0
  %v1116 = vadd.f32 0.0, %v1115
  %1117 = vmatmul.f32.gmra.mxu0 %v1057
  %v1118 = vpop.f32.mrf.mxu0
  %v1119 = vadd.f32 0.0, %v1118
  %1120 = vdwg.mxu0
  %v1122 = vsel %vm762, %v950, 0
  %v1125 = vsel %vm762, %v951, 0
  %v1128 = vsel %vm762, %v952, 0
  %v1131 = vsel %vm762, %v953, 0
  %v1134 = vsel %vm762, %v954, 0
  %v1137 = vsel %vm762, %v955, 0
  %v1140 = vsel %vm762, %v956, 0
  %v1143 = vsel %vm762, %v957, 0
  %v1146 = vsel %vm762, %v958, 0
  %v1149 = vsel %vm762, %v959, 0
  %v1152 = vsel %vm762, %v960, 0
  %v1155 = vsel %vm762, %v961, 0
  %v1158 = vsel %vm762, %v962, 0
  %v1161 = vsel %vm762, %v963, 0
  %v1164 = vsel %vm762, %v964, 0
  %1166 = vmatpush.msra.mxu0 0.0
  %1167 = vmatpush.msra.mxu0 0.0
  %1168 = vmatpush.msra.mxu0 0.0
  %1169 = vmatpush.msra.mxu0 0.0
  %1170 = vmatpush.msra.mxu0 0.0
  %1171 = vmatpush.msra.mxu0 0.0
  %1172 = vmatpush.msra.mxu0 0.0
  %1173 = vmatpush.msra.mxu0 0.0
  %1174 = vmatpush.msra.mxu0 0.0
  %1175 = vmatpush.msra.mxu0 0.0
  %1176 = vmatpush.msra.mxu0 0.0
  %1177 = vmatpush.msra.mxu0 0.0
  %1178 = vmatpush.msra.mxu0 0.0
  %1179 = vmatpush.msra.mxu0 0.0
  %1180 = vmatpush.msra.mxu0 %v1011
  %1181 = vmatpush.msra.mxu0 %v1010
  %1182 = vmatmul.f32.gmra.mxu0 %v1122
  %v1183 = vpop.f32.mrf.mxu0
  %v1184 = vadd.f32 %v1077, %v1183
  %1185 = vmatmul.f32.gmra.mxu0 %v1125
  %v1186 = vpop.f32.mrf.mxu0
  %v1187 = vadd.f32 %v1080, %v1186
  %1188 = vmatmul.f32.gmra.mxu0 %v1128
  %v1189 = vpop.f32.mrf.mxu0
  %v1190 = vadd.f32 %v1083, %v1189
  %1191 = vmatmul.f32.gmra.mxu0 %v1131
  %v1192 = vpop.f32.mrf.mxu0
  %v1193 = vadd.f32 %v1086, %v1192
  %1194 = vmatmul.f32.gmra.mxu0 %v1134
  %v1195 = vpop.f32.mrf.mxu0
  %v1196 = vadd.f32 %v1089, %v1195
  %1197 = vmatmul.f32.gmra.mxu0 %v1137
  %v1198 = vpop.f32.mrf.mxu0
  %v1199 = vadd.f32 %v1092, %v1198
  %1200 = vmatmul.f32.gmra.mxu0 %v1140
  %v1201 = vpop.f32.mrf.mxu0
  %v1202 = vadd.f32 %v1095, %v1201
  %1203 = vmatmul.f32.gmra.mxu0 %v1143
  %v1204 = vpop.f32.mrf.mxu0
  %v1205 = vadd.f32 %v1098, %v1204
  %1206 = vmatmul.f32.gmra.mxu0 %v1146
  %v1207 = vpop.f32.mrf.mxu0
  %v1208 = vadd.f32 %v1101, %v1207
  %1209 = vmatmul.f32.gmra.mxu0 %v1149
  %v1210 = vpop.f32.mrf.mxu0
  %v1211 = vadd.f32 %v1104, %v1210
  %1212 = vmatmul.f32.gmra.mxu0 %v1152
  %v1213 = vpop.f32.mrf.mxu0
  %v1214 = vadd.f32 %v1107, %v1213
  %1215 = vmatmul.f32.gmra.mxu0 %v1155
  %v1216 = vpop.f32.mrf.mxu0
  %v1217 = vadd.f32 %v1110, %v1216
  %1218 = vmatmul.f32.gmra.mxu0 %v1158
  %v1219 = vpop.f32.mrf.mxu0
  %v1220 = vadd.f32 %v1113, %v1219
  %1221 = vmatmul.f32.gmra.mxu0 %v1161
  %v1222 = vpop.f32.mrf.mxu0
  %v1223 = vadd.f32 %v1116, %v1222
  %1224 = vmatmul.f32.gmra.mxu0 %v1164
  %v1225 = vpop.f32.mrf.mxu0
  %v1226 = vadd.f32 %v1119, %v1225
  %1227 = vdwg.mxu0
  %v1228 = vld [vmem:[%s1 + $0x38] sm:$0xff]
  %v1229 = vld [vmem:[%s1 + $0x40] sm:$0xff]
  %v1231 = vsel %vm762, %v995, 0
  %v1234 = vsel %vm762, %v996, 0
  %v1237 = vsel %vm762, %v997, 0
  %v1240 = vsel %vm762, %v998, 0
  %v1243 = vsel %vm762, %v999, 0
  %v1246 = vsel %vm762, %v1000, 0
  %v1249 = vsel %vm762, %v1001, 0
  %v1252 = vsel %vm762, %v1002, 0
  %v1255 = vsel %vm762, %v1003, 0
  %v1258 = vsel %vm762, %v1004, 0
  %v1261 = vsel %vm762, %v1005, 0
  %v1264 = vsel %vm762, %v1006, 0
  %v1267 = vsel %vm762, %v1007, 0
  %v1270 = vsel %vm762, %v1008, 0
  %v1273 = vsel %vm762, %v1009, 0
  %1275 = vmatpush.msra.mxu0 0.0
  %1276 = vmatpush.msra.mxu0 0.0
  %1277 = vmatpush.msra.mxu0 0.0
  %1278 = vmatpush.msra.mxu0 0.0
  %1279 = vmatpush.msra.mxu0 0.0
  %1280 = vmatpush.msra.mxu0 0.0
  %1281 = vmatpush.msra.mxu0 0.0
  %1282 = vmatpush.msra.mxu0 0.0
  %1283 = vmatpush.msra.mxu0 0.0
  %1284 = vmatpush.msra.mxu0 0.0
  %1285 = vmatpush.msra.mxu0 0.0
  %1286 = vmatpush.msra.mxu0 0.0
  %1287 = vmatpush.msra.mxu0 0.0
  %1288 = vmatpush.msra.mxu0 0.0
  %1289 = vmatpush.msra.mxu0 %v1229
  %1290 = vmatpush.msra.mxu0 %v1228
  %1291 = vmatmul.f32.gmra.mxu0 %v1231
  %v1292 = vpop.f32.mrf.mxu0
  %v1293 = vadd.f32 0.0, %v1292
  %1294 = vmatmul.f32.gmra.mxu0 %v1234
  %v1295 = vpop.f32.mrf.mxu0
  %v1296 = vadd.f32 0.0, %v1295
  %1297 = vmatmul.f32.gmra.mxu0 %v1237
  %v1298 = vpop.f32.mrf.mxu0
  %v1299 = vadd.f32 0.0, %v1298
  %1300 = vmatmul.f32.gmra.mxu0 %v1240
  %v1301 = vpop.f32.mrf.mxu0
  %v1302 = vadd.f32 0.0, %v1301
  %1303 = vmatmul.f32.gmra.mxu0 %v1243
  %v1304 = vpop.f32.mrf.mxu0
  %v1305 = vadd.f32 0.0, %v1304
  %1306 = vmatmul.f32.gmra.mxu0 %v1246
  %v1307 = vpop.f32.mrf.mxu0
  %v1308 = vadd.f32 0.0, %v1307
  %1309 = vmatmul.f32.gmra.mxu0 %v1249
  %v1310 = vpop.f32.mrf.mxu0
  %v1311 = vadd.f32 0.0, %v1310
  %1312 = vmatmul.f32.gmra.mxu0 %v1252
  %v1313 = vpop.f32.mrf.mxu0
  %v1314 = vadd.f32 0.0, %v1313
  %1315 = vmatmul.f32.gmra.mxu0 %v1255
  %v1316 = vpop.f32.mrf.mxu0
  %v1317 = vadd.f32 0.0, %v1316
  %1318 = vmatmul.f32.gmra.mxu0 %v1258
  %v1319 = vpop.f32.mrf.mxu0
  %v1320 = vadd.f32 0.0, %v1319
  %1321 = vmatmul.f32.gmra.mxu0 %v1261
  %v1322 = vpop.f32.mrf.mxu0
  %v1323 = vadd.f32 0.0, %v1322
  %1324 = vmatmul.f32.gmra.mxu0 %v1264
  %v1325 = vpop.f32.mrf.mxu0
  %v1326 = vadd.f32 0.0, %v1325
  %1327 = vmatmul.f32.gmra.mxu0 %v1267
  %v1328 = vpop.f32.mrf.mxu0
  %v1329 = vadd.f32 0.0, %v1328
  %1330 = vmatmul.f32.gmra.mxu0 %v1270
  %v1331 = vpop.f32.mrf.mxu0
  %v1332 = vadd.f32 0.0, %v1331
  %1333 = vmatmul.f32.gmra.mxu0 %v1273
  %v1334 = vpop.f32.mrf.mxu0
  %v1335 = vadd.f32 0.0, %v1334
  %1336 = vdwg.mxu0
  %v1337 = vadd.f32 %v1184, %v1293
  %v1338 = vadd.f32 %v1187, %v1296
  %v1339 = vadd.f32 %v1190, %v1299
  %v1340 = vadd.f32 %v1193, %v1302
  %v1341 = vadd.f32 %v1196, %v1305
  %v1342 = vadd.f32 %v1199, %v1308
  %v1343 = vadd.f32 %v1202, %v1311
  %v1344 = vadd.f32 %v1205, %v1314
  %v1345 = vadd.f32 %v1208, %v1317
  %v1346 = vadd.f32 %v1211, %v1320
  %v1347 = vadd.f32 %v1214, %v1323
  %v1348 = vadd.f32 %v1217, %v1326
  %v1349 = vadd.f32 %v1220, %v1329
  %v1350 = vadd.f32 %v1223, %v1332
  %v1351 = vadd.f32 %v1226, %v1335
  %vm1352 = vcmask 261120
  %v1353 = vsel %vm1352, %v1337, 0.0
  %v1354 = vsel %vm1352, %v1338, 0.0
  %v1355 = vadd.f32 %v1353, %v1354
  %v1356 = vsel %vm1352, %v1339, 0.0
  %v1357 = vadd.f32 %v1355, %v1356
  %v1358 = vsel %vm1352, %v1340, 0.0
  %v1359 = vadd.f32 %v1357, %v1358
  %v1360 = vsel %vm1352, %v1341, 0.0
  %v1361 = vadd.f32 %v1359, %v1360
  %v1362 = vsel %vm1352, %v1342, 0.0
  %v1363 = vadd.f32 %v1361, %v1362
  %v1364 = vsel %vm1352, %v1343, 0.0
  %v1365 = vadd.f32 %v1363, %v1364
  %v1366 = vsel %vm1352, %v1344, 0.0
  %v1367 = vadd.f32 %v1365, %v1366
  %v1368 = vsel %vm1352, %v1345, 0.0
  %v1369 = vadd.f32 %v1367, %v1368
  %v1370 = vsel %vm1352, %v1346, 0.0
  %v1371 = vadd.f32 %v1369, %v1370
  %v1372 = vsel %vm1352, %v1347, 0.0
  %v1373 = vadd.f32 %v1371, %v1372
  %v1374 = vsel %vm1352, %v1348, 0.0
  %v1375 = vadd.f32 %v1373, %v1374
  %v1376 = vsel %vm1352, %v1349, 0.0
  %v1377 = vadd.f32 %v1375, %v1376
  %v1378 = vsel %vm1352, %v1350, 0.0
  %v1379 = vadd.f32 %v1377, %v1378
  %v1380 = vsel %vm1352, %v1351, 0.0
  %v1381 = vadd.f32 %v1379, %v1380
  %v1382 = vrot.slane %v1381, 4
  %v1383 = vadd.f32 %v1381, %v1382
  %v1384 = vrot.slane %v1383, 2
  %v1385 = vadd.f32 %v1383, %v1384
  %v1386 = vrot.slane %v1385, 1
  %v1387 = vadd.f32 %v1385, %v1386
  %v1388 = vmul.f32 %v1387, %v804
  %v1389 = vmul.f32 %v1337, %v1337
  %v1390 = vmul.f32 %v1338, %v1338
  %v1391 = vmul.f32 %v1339, %v1339
  %v1392 = vmul.f32 %v1340, %v1340
  %v1393 = vmul.f32 %v1341, %v1341
  %v1394 = vmul.f32 %v1342, %v1342
  %v1395 = vmul.f32 %v1343, %v1343
  %v1396 = vmul.f32 %v1344, %v1344
  %v1397 = vmul.f32 %v1345, %v1345
  %v1398 = vmul.f32 %v1346, %v1346
  %v1399 = vmul.f32 %v1347, %v1347
  %v1400 = vmul.f32 %v1348, %v1348
  %v1401 = vmul.f32 %v1349, %v1349
  %v1402 = vmul.f32 %v1350, %v1350
  %v1403 = vmul.f32 %v1351, %v1351
  %v1404 = vsel %vm1352, %v1389, 0.0
  %v1405 = vsel %vm1352, %v1390, 0.0
  %v1406 = vadd.f32 %v1404, %v1405
  %v1407 = vsel %vm1352, %v1391, 0.0
  %v1408 = vadd.f32 %v1406, %v1407
  %v1409 = vsel %vm1352, %v1392, 0.0
  %v1410 = vadd.f32 %v1408, %v1409
  %v1411 = vsel %vm1352, %v1393, 0.0
  %v1412 = vadd.f32 %v1410, %v1411
  %v1413 = vsel %vm1352, %v1394, 0.0
  %v1414 = vadd.f32 %v1412, %v1413
  %v1415 = vsel %vm1352, %v1395, 0.0
  %v1416 = vadd.f32 %v1414, %v1415
  %v1417 = vsel %vm1352, %v1396, 0.0
  %v1418 = vadd.f32 %v1416, %v1417
  %v1419 = vsel %vm1352, %v1397, 0.0
  %v1420 = vadd.f32 %v1418, %v1419
  %v1421 = vsel %vm1352, %v1398, 0.0
  %v1422 = vadd.f32 %v1420, %v1421
  %v1423 = vsel %vm1352, %v1399, 0.0
  %v1424 = vadd.f32 %v1422, %v1423
  %v1425 = vsel %vm1352, %v1400, 0.0
  %v1426 = vadd.f32 %v1424, %v1425
  %v1427 = vsel %vm1352, %v1401, 0.0
  %v1428 = vadd.f32 %v1426, %v1427
  %v1429 = vsel %vm1352, %v1402, 0.0
  %v1430 = vadd.f32 %v1428, %v1429
  %v1431 = vsel %vm1352, %v1403, 0.0
  %v1432 = vadd.f32 %v1430, %v1431
  %v1433 = vrot.slane %v1432, 4
  %v1434 = vadd.f32 %v1432, %v1433
  %v1435 = vrot.slane %v1434, 2
  %v1436 = vadd.f32 %v1434, %v1435
  %v1437 = vrot.slane %v1436, 1
  %v1438 = vadd.f32 %v1436, %v1437
  %v1439 = vmul.f32 %v1438, %v804
  %v1440 = vmul.f32 %v1388, %v1388
  %v1441 = vsub.f32 %v1439, %v1440
  %v1442 = vadd.f32 %v1441, 1e-05
  %v1443 = vrsqrt.pop %v1442
  %v1444 = vmul.f32 %v1443, %v1442
  %v1445 = vmul.f32 %v1444, %v1443
  %v1446 = vmul.f32 0.5, %v1445
  %v1447 = vsub.f32 1.5, %v1446
  %v1448 = vmul.f32 %v1443, %v1447
  %vm1449 = vweird.f32 %v1442
  %vm1450 = vweird.f32 %v1443
  %vm1451 = vmor %vm1449, %vm1450
  %v1452 = vsel %vm1451, %v1443, %v1448
  %v1453 = vmul.f32 %v16, %v1452
  %v1454 = vperm.slane %v1453, 0
  %v1455 = vmul.f32 %v1337, %v1454
  %v1456 = vmul.f32 %v1338, %v1454
  %v1457 = vmul.f32 %v1339, %v1454
  %v1458 = vmul.f32 %v1340, %v1454
  %v1459 = vmul.f32 %v1341, %v1454
  %v1460 = vmul.f32 %v1342, %v1454
  %v1461 = vmul.f32 %v1343, %v1454
  %v1462 = vmul.f32 %v1344, %v1454
  %v1463 = vmul.f32 %v1345, %v1454
  %v1464 = vmul.f32 %v1346, %v1454
  %v1465 = vmul.f32 %v1347, %v1454
  %v1466 = vmul.f32 %v1348, %v1454
  %v1467 = vmul.f32 %v1349, %v1454
  %v1468 = vmul.f32 %v1350, %v1454
  %v1469 = vmul.f32 %v1351, %v1454
  %v1470 = vmul.f32 %v1388, %v1453
  %v1471 = vsub.f32 %v17, %v1470
  %v1472 = vperm.slane %v1471, 0
  %v1473 = vadd.f32 %v1455, %v1472
  %v1474 = vadd.f32 %v1456, %v1472
  %v1475 = vadd.f32 %v1457, %v1472
  %v1476 = vadd.f32 %v1458, %v1472
  %v1477 = vadd.f32 %v1459, %v1472
  %v1478 = vadd.f32 %v1460, %v1472
  %v1479 = vadd.f32 %v1461, %v1472
  %v1480 = vadd.f32 %v1462, %v1472
  %v1481 = vadd.f32 %v1463, %v1472
  %v1482 = vadd.f32 %v1464, %v1472
  %v1483 = vadd.f32 %v1465, %v1472
  %v1484 = vadd.f32 %v1466, %v1472
  %v1485 = vadd.f32 %v1467, %v1472
  %v1486 = vadd.f32 %v1468, %v1472
  %v1487 = vadd.f32 %v1469, %v1472
  %v1488 = vmax.f32 %v1473, 0.0
  %v1489 = vmax.f32 %v1474, 0.0
  %v1490 = vmax.f32 %v1475, 0.0
  %v1491 = vmax.f32 %v1476, 0.0
  %v1492 = vmax.f32 %v1477, 0.0
  %v1493 = vmax.f32 %v1478, 0.0
  %v1494 = vmax.f32 %v1479, 0.0
  %v1495 = vmax.f32 %v1480, 0.0
  %v1496 = vmax.f32 %v1481, 0.0
  %v1497 = vmax.f32 %v1482, 0.0
  %v1498 = vmax.f32 %v1483, 0.0
  %v1499 = vmax.f32 %v1484, 0.0
  %v1500 = vmax.f32 %v1485, 0.0
  %v1501 = vmax.f32 %v1486, 0.0
  %v1502 = vmax.f32 %v1487, 0.0
  %1518 = vrot.lane.b32.xlu0 %v1488, 32
  %v1519 = vpop.permute.xlu0 %1518
  %1520 = vrot.lane.b32.xlu0 %v1489, 32
  %v1521 = vpop.permute.xlu0 %1520
  %1522 = vrot.lane.b32.xlu0 %v1490, 32
  %v1523 = vpop.permute.xlu0 %1522
  %1524 = vrot.lane.b32.xlu0 %v1491, 32
  %v1525 = vpop.permute.xlu0 %1524
  %1526 = vrot.lane.b32.xlu0 %v1492, 32
  %v1527 = vpop.permute.xlu0 %1526
  %1528 = vrot.lane.b32.xlu0 %v1493, 32
  %v1529 = vpop.permute.xlu0 %1528
  %1530 = vrot.lane.b32.xlu0 %v1494, 32
  %v1531 = vpop.permute.xlu0 %1530
  %1532 = vrot.lane.b32.xlu0 %v1495, 32
  %v1533 = vpop.permute.xlu0 %1532
  %1534 = vrot.lane.b32.xlu0 %v1496, 32
  %v1535 = vpop.permute.xlu0 %1534
  %1536 = vrot.lane.b32.xlu0 %v1497, 32
  %v1537 = vpop.permute.xlu0 %1536
  %1538 = vrot.lane.b32.xlu0 %v1498, 32
  %v1539 = vpop.permute.xlu0 %1538
  %1540 = vrot.lane.b32.xlu0 %v1499, 32
  %v1541 = vpop.permute.xlu0 %1540
  %1542 = vrot.lane.b32.xlu0 %v1500, 32
  %v1543 = vpop.permute.xlu0 %1542
  %1544 = vrot.lane.b32.xlu0 %v1501, 32
  %v1545 = vpop.permute.xlu0 %1544
  %1546 = vrot.lane.b32.xlu0 %v1502, 32
  %v1547 = vpop.permute.xlu0 %1546
  %v1563 = vsel %vm1352, %v1488, %v1519
  %v1564 = vsel %vm1352, %v1489, %v1521
  %v1565 = vsel %vm1352, %v1490, %v1523
  %v1566 = vsel %vm1352, %v1491, %v1525
  %v1567 = vsel %vm1352, %v1492, %v1527
  %v1568 = vsel %vm1352, %v1493, %v1529
  %v1569 = vsel %vm1352, %v1494, %v1531
  %v1570 = vsel %vm1352, %v1495, %v1533
  %v1571 = vsel %vm1352, %v1496, %v1535
  %v1572 = vsel %vm1352, %v1497, %v1537
  %v1573 = vsel %vm1352, %v1498, %v1539
  %v1574 = vsel %vm1352, %v1499, %v1541
  %v1575 = vsel %vm1352, %v1500, %v1543
  %v1576 = vsel %vm1352, %v1501, %v1545
  %v1577 = vsel %vm1352, %v1502, %v1547
  %v1578 = vld [vmem:[%s2] sm:$0xff]
  %v1579 = vld [vmem:[%s2 + $0x8] sm:$0xff]
  %v1580 = vld [vmem:[%s2 + $0x10] sm:$0xff]
  %v1581 = vld [vmem:[%s2 + $0x18] sm:$0xff]
  %v1582 = vld [vmem:[%s2 + $0x20] sm:$0xff]
  %v1583 = vld [vmem:[%s2 + $0x28] sm:$0xff]
  %v1584 = vld [vmem:[%s2 + $0x30] sm:$0xff]
  %v1585 = vld [vmem:[%s2 + $0x38] sm:$0xff]
  %v1586 = vld [vmem:[%s2 + $0x40] sm:$0xff]
  %v1587 = vld [vmem:[%s2 + $0x48] sm:$0xff]
  %v1588 = vld [vmem:[%s2 + $0x50] sm:$0xff]
  %v1589 = vld [vmem:[%s2 + $0x58] sm:$0xff]
  %v1590 = vld [vmem:[%s2 + $0x60] sm:$0xff]
  %v1591 = vld [vmem:[%s2 + $0x68] sm:$0xff]
  %v1592 = vld [vmem:[%s2 + $0x70] sm:$0xff]
  %v1593 = vmul.f32 %v1563, %v1578
  %v1594 = vmul.f32 %v1564, %v1579
  %v1595 = vmul.f32 %v1565, %v1580
  %v1596 = vmul.f32 %v1566, %v1581
  %v1597 = vmul.f32 %v1567, %v1582
  %v1598 = vmul.f32 %v1568, %v1583
  %v1599 = vmul.f32 %v1569, %v1584
  %v1600 = vmul.f32 %v1570, %v1585
  %v1601 = vmul.f32 %v1571, %v1586
  %v1602 = vmul.f32 %v1572, %v1587
  %v1603 = vmul.f32 %v1573, %v1588
  %v1604 = vmul.f32 %v1574, %v1589
  %v1605 = vmul.f32 %v1575, %v1590
  %v1606 = vmul.f32 %v1576, %v1591
  %v1607 = vmul.f32 %v1577, %v1592
  %v1608 = vlaneseq
  %v1609 = vand.u32 %v1608, 127
  %v1610 = vmul.u32 %v20, 30
  %vm1611 = vcmp.ge.s32.totalorder %v1609, %v1610
  %v1612 = vadd.s32 %v20, 1
  %v1613 = vmul.u32 %v1612, 30
  %vm1614 = vcmp.lt.s32.totalorder %v1609, %v1613
  %vm1615 = vmand %vm1611, %vm1614
  %v1616 = vsel %vm1615, 1, 0
  %v1617 = vcvt.s32.f32 %v1616
  %vm1618 = vcmask 982016
  %v1620 = vsel %vm1618, %v1617, 0
  %1622 = vmatpush.msra.mxu0 0.0
  %1623 = vmatpush.msra.mxu0 %v1607
  %1624 = vmatpush.msra.mxu0 %v1606
  %1625 = vmatpush.msra.mxu0 %v1605
  %1626 = vmatpush.msra.mxu0 %v1604
  %1627 = vmatpush.msra.mxu0 %v1603
  %1628 = vmatpush.msra.mxu0 %v1602
  %1629 = vmatpush.msra.mxu0 %v1601
  %1630 = vmatpush.msra.mxu0 %v1600
  %1631 = vmatpush.msra.mxu0 %v1599
  %1632 = vmatpush.msra.mxu0 %v1598
  %1633 = vmatpush.msra.mxu0 %v1597
  %1634 = vmatpush.msra.mxu0 %v1596
  %1635 = vmatpush.msra.mxu0 %v1595
  %1636 = vmatpush.msra.mxu0 %v1594
  %1637 = vmatpush.msra.mxu0 %v1593
  %1638 = vmatmul.f32.gmra.mxu0 %v1620
  %v1639 = vpop.f32.mrf.mxu0
  %v1640 = vadd.f32 0.0, %v1639
  %1641 = vdwg.mxu0
  %v1642 = vmul.u32 %v1609, 32
  %vm1643 = vcmp.ge.s32.totalorder %v20, %v1642
  %vm1644 = vcmp.ge.s32.totalorder %v21, %v1642
  %vm1645 = vcmp.ge.s32.totalorder %v22, %v1642
  %vm1646 = vcmp.ge.s32.totalorder %v23, %v1642
  %vm1647 = vcmp.ge.s32.totalorder %v24, %v1642
  %vm1648 = vcmp.ge.s32.totalorder %v25, %v1642
  %vm1649 = vcmp.ge.s32.totalorder %v26, %v1642
  %vm1650 = vcmp.ge.s32.totalorder %v27, %v1642
  %v1651 = vadd.s32 %v1609, 1
  %v1652 = vmul.u32 %v1651, 32
  %vm1653 = vcmp.lt.s32.totalorder %v20, %v1652
  %vm1654 = vcmp.lt.s32.totalorder %v21, %v1652
  %vm1655 = vcmp.lt.s32.totalorder %v22, %v1652
  %vm1656 = vcmp.lt.s32.totalorder %v23, %v1652
  %vm1657 = vcmp.lt.s32.totalorder %v24, %v1652
  %vm1658 = vcmp.lt.s32.totalorder %v25, %v1652
  %vm1659 = vcmp.lt.s32.totalorder %v26, %v1652
  %vm1660 = vcmp.lt.s32.totalorder %v27, %v1652
  %vm1661 = vmand %vm1643, %vm1653
  %vm1662 = vmand %vm1644, %vm1654
  %vm1663 = vmand %vm1645, %vm1655
  %vm1664 = vmand %vm1646, %vm1656
  %vm1665 = vmand %vm1647, %vm1657
  %vm1666 = vmand %vm1648, %vm1658
  %vm1667 = vmand %vm1649, %vm1659
  %vm1668 = vmand %vm1650, %vm1660
  %v1669 = vsel %vm1661, 1, 0
  %v1670 = vsel %vm1662, 1, 0
  %v1671 = vsel %vm1663, 1, 0
  %v1672 = vsel %vm1664, 1, 0
  %v1673 = vsel %vm1665, 1, 0
  %v1674 = vsel %vm1666, 1, 0
  %v1675 = vsel %vm1667, 1, 0
  %v1676 = vsel %vm1668, 1, 0
  %v1677 = vcvt.s32.f32 %v1669
  %v1678 = vcvt.s32.f32 %v1670
  %v1679 = vcvt.s32.f32 %v1671
  %v1680 = vcvt.s32.f32 %v1672
  %v1681 = vcvt.s32.f32 %v1673
  %v1682 = vcvt.s32.f32 %v1674
  %v1683 = vcvt.s32.f32 %v1675
  %v1684 = vcvt.s32.f32 %v1676
  %v1685 = vperm.slane %v18, 0
  %vm1686 = vcmask 523264
  %v1688 = vsel %vm1686, %v1640, 0
  %1690 = vmatpush.msra.mxu0 0.0
  %1691 = vmatpush.msra.mxu0 0.0
  %1692 = vmatpush.msra.mxu0 0.0
  %1693 = vmatpush.msra.mxu0 0.0
  %1694 = vmatpush.msra.mxu0 0.0
  %1695 = vmatpush.msra.mxu0 0.0
  %1696 = vmatpush.msra.mxu0 0.0
  %1697 = vmatpush.msra.mxu0 0.0
  %1698 = vmatpush.msra.mxu0 %v1684
  %1699 = vmatpush.msra.mxu0 %v1683
  %1700 = vmatpush.msra.mxu0 %v1682
  %1701 = vmatpush.msra.mxu0 %v1681
  %1702 = vmatpush.msra.mxu0 %v1680
  %1703 = vmatpush.msra.mxu0 %v1679
  %1704 = vmatpush.msra.mxu0 %v1678
  %1705 = vmatpush.msra.mxu0 %v1677
  %1706 = vmatmul.f32.gmra.mxu0 %v1688
  %v1707 = vpop.f32.mrf.mxu0
  %v1708 = vadd.f32 %v1685, %v1707
  %1709 = vdwg.mxu0
  %vm1710 = vcmask 11264
  %1711 = vst.msk [vmem:[%s3] sm:$0xf] %vm1710, %v1708
  // Predicated region
  $region14: #{cnn_forward_pallas.1} parent=0 // pred_check
    _
  $region15: #{cnn_forward_pallas.1} parent=0 // pred_check_branch
    %1713 = sbr.rel (0) target = $region17
  $region16: #{cnn_forward_pallas.1} parent=0 // pred_region
    _
  $region17: #{cnn_forward_pallas.1} parent=0 // pred_fallthru
    _
  // Predicated region
  $region18: #{cnn_forward_pallas.1} parent=0 // pred_check
    _
  $region19: #{cnn_forward_pallas.1} parent=0 // pred_check_branch
    %1715 = sbr.rel (0) target = $region21
  $region20: #{cnn_forward_pallas.1} parent=0 // pred_region
    _
  $region21: #{cnn_forward_pallas.1} parent=0 // pred_fallthru
    _

</llo_original>
